<compile_context>
chip_gen: v6e
topology: v6e:2x2x1
jax: 0.10.0
libtpu: 0.0.40
codegen_flags: <defaults>
</compile_context>

<pallas_src>
import jax
import jax.numpy as jnp
from jax.experimental import pallas as pl
from jax.experimental.pallas import tpu as pltpu


def _round_up(x, m):
    return ((x + m - 1) // m) * m


def _min_grid_steps():
    """2 on v7x (2 TensorCores per chip share one 'parallel' grid axis),
    1 on v5e/v6e (extra grid steps there are pure per-step overhead)."""
    try:
        kind = jax.devices()[0].device_kind.lower()
    except Exception:
        return 1
    return 2 if ("v7" in kind or "7x" in kind) else 1


def _choose_grid(n, d, cpad, out_bytes, *, vmem_step_budget=20 * 1024 * 1024):
    """Pick (num_steps, row_tile): as few grid steps as possible (one per
    TensorCore) while the per-step working set stays inside a conservative
    VMEM budget (only matters for large-D ROI-head variants)."""
    fixed = d * cpad * 2 + cpad * 4                    # bf16 weight + f32 bias (grid-constant)
    per_row = 2 * d * 4 + 2 * cpad * out_bytes          # double-buffered x (f32) + out tiles
    tm_cap = max(16, (vmem_step_budget - fixed) // per_row)
    steps = max(_min_grid_steps(), pl.cdiv(n, tm_cap))
    if steps <= 1:
        return 1, n                                     # single full-extent row block
    tm = min(_round_up(pl.cdiv(n, steps), 16), _round_up(n, 16))
    if tm >= n:
        return 1, n
    return pl.cdiv(n, tm), tm


def fused_fast_rcnn_kernel(x_ref, w_ref, b_ref, out_ref):
    """One grid step: a tile of rows of x against the fused (small) weight.

    x_ref:   (tm, D)      float32 (cast to bf16 on-chip)
    w_ref:   (D, Cpad)    bfloat16  (cls | bbox weights, zero-padded columns)
    b_ref:   (1, Cpad)    float32   (cls | bbox biases,  zero-padded columns)
    out_ref: (tm, Cpad)   bfloat16  lane-dense output (Cpad % 128 == 0)
    """
    x_bf = x_ref[...].astype(jnp.bfloat16)              # on-chip cast, no extra HBM pass
    acc = jnp.dot(x_bf, w_ref[...], preferred_element_type=jnp.float32)
    out_ref[...] = (acc + b_ref[...]).astype(out_ref.dtype)


# Cache whether this JAX build accepts single-buffering grid-constant operands.
_SINGLE_BUFFER_OK = None


def post_train_fast_rcnn_forward(x, w_fused, b_fused, c1, c2,
                                 *, out_dtype=jnp.bfloat16):
    """x: (N, D) float32 (not pre-padded / pre-cast); w_fused: (D, Cpad) bf16;
    b_fused: (1, Cpad) f32.  Returns (scores (N, c1) f32, deltas (N, c2) f32)."""
    n, d = x.shape
    cpad = w_fused.shape[1]
    out_bytes = jnp.dtype(out_dtype).itemsize
    steps, tm = _choose_grid(n, d, cpad, out_bytes)

    def build(single_buffer_const):
        const_kw = {}
        if single_buffer_const:
            # Grid-constant operands: one resident VMEM buffer instead of the
            # default double buffer (frees VMEM for bigger row tiles at large D).
            const_kw = dict(pipeline_mode=pl.Buffered(1))
        return pl.pallas_call(
            fused_fast_rcnn_kernel,
            out_shape=jax.ShapeDtypeStruct((n, cpad), out_dtype),
            grid_spec=pl.GridSpec(
                grid=(steps,),
                in_specs=[
                    # x row tile; last block may be ragged (OOB rows dropped on output)
                    pl.BlockSpec((tm, d), lambda i: (i, 0)),
                    # fused weight / bias: constant block index -> fetched once
                    pl.BlockSpec((d, cpad), lambda i: (0, 0), **const_kw),
                    pl.BlockSpec((1, cpad), lambda i: (0, 0), **const_kw),
                ],
                out_specs=pl.BlockSpec((tm, cpad), lambda i: (i, 0)),
            ),
            compiler_params=pltpu.CompilerParams(
                dimension_semantics=("parallel",),
                vmem_limit_bytes=48 * 1024 * 1024,
            ),
        )

    global _SINGLE_BUFFER_OK
    if _SINGLE_BUFFER_OK is None:
        try:
            out = build(True)(x, w_fused, b_fused)
            _SINGLE_BUFFER_OK = True
        except Exception:
            # pipeline_mode single-buffering unsupported in this build: fall back.
            _SINGLE_BUFFER_OK = False
            out = build(False)(x, w_fused, b_fused)
    else:
        out = build(_SINGLE_BUFFER_OK)(x, w_fused, b_fused)

    # Only remaining post-kernel passes: column slices (+ f32 upcast) over the
    # halved-size (bf16) lane-padded result.
    scores = out[:, :c1].astype(jnp.float32)
    deltas = out[:, c1:c1 + c2].astype(jnp.float32)
    return scores, deltas


class PostTrainFastRCNNOutputLayersPallas:
    """Deterministic JAX re-implementation of the module's __init__ + forward."""

    def __init__(self, input_size, num_classes, *, mode="ours",
                 unknown_regression=True, box_dim=4, key=None):
        self.num_classes = num_classes
        self.num_bbox_reg_classes = num_classes
        self.num_ll_classes = num_classes + 1
        if mode == "ours":
            self.num_ll_classes += 1
            if unknown_regression:
                self.num_bbox_reg_classes = num_classes + 1

        if key is None:
            key = jax.random.PRNGKey(0)
        k1, k2 = jax.random.split(key)
        # nn.init.normal_(cls_score.weight, std=0.01); bias = 0
        self.wc = 0.01 * jax.random.normal(
            k1, (self.num_ll_classes, input_size), dtype=jnp.float32)
        self.bc = jnp.zeros((1, self.num_ll_classes), dtype=jnp.float32)
        # nn.init.normal_(bbox_pred.weight, std=0.001); bias = 0
        self.wb = 0.001 * jax.random.normal(
            k2, (self.num_bbox_reg_classes * box_dim, input_size), dtype=jnp.float32)
        self.bb = jnp.zeros((1, self.num_bbox_reg_classes * box_dim), dtype=jnp.float32)

        # ---- Precompute the fused, transposed, lane-padded weight ONCE. ----
        self.c1 = self.num_ll_classes
        self.c2 = self.num_bbox_reg_classes * box_dim
        c_total = self.c1 + self.c2
        c_pad = _round_up(c_total, 128)
        w_fused = jnp.concatenate([self.wc.T, self.wb.T], axis=1)   # (D, C1+C2)
        w_fused = jnp.pad(w_fused, ((0, 0), (0, c_pad - c_total)))
        self.w_fused = w_fused.astype(jnp.bfloat16)                 # (D, Cpad) bf16
        b_fused = jnp.concatenate([self.bc, self.bb], axis=1)       # (1, C1+C2)
        self.b_fused = jnp.pad(b_fused, ((0, 0), (0, c_pad - c_total))).astype(jnp.float32)

    def forward(self, x):
        # flatten (N, C, H, W) -> (N, C*H*W), row-major (matches torch.flatten)
        if x.ndim > 2:
            x = x.reshape(x.shape[0], -1)
        return post_train_fast_rcnn_forward(
            x, self.w_fused, self.b_fused, self.c1, self.c2)


if __name__ == "__main__":
    key = jax.random.PRNGKey(0)
    k_x, k_params = jax.random.split(key)

    # Per-region ROI features: N proposal boxes, small (C, H, W) feature map.
    # N is deliberately NOT a tile multiple to exercise the no-pad ragged path.
    N, C, H, W = 500, 4, 4, 4        # D = 64
    num_classes = 10
    x = jax.random.normal(k_x, (N, C, H, W), dtype=jnp.float32)

    module = PostTrainFastRCNNOutputLayersPallas(
        input_size=C * H * W, num_classes=num_classes,
        mode="ours", unknown_regression=True, key=k_params)

    scores, deltas = module.forward(x)
    scores, deltas = jax.block_until_ready((scores, deltas))

    # Reference: bf16 operands, f32 accumulation (kernel result additionally
    # rounds through bf16 on output -> tolerance covers ~1 bf16 ulp).
    xf = x.reshape(N, -1)
    xf_bf = xf.astype(jnp.bfloat16).astype(jnp.float32)
    w_full = jnp.concatenate([module.wc.T, module.wb.T], axis=1)
    w_bf = w_full.astype(jnp.bfloat16).astype(jnp.float32)
    b_full = jnp.concatenate([module.bc, module.bb], axis=1)
    ref = xf_bf @ w_bf + b_full
    c1 = module.c1
    scores_ref = ref[:, :c1]
    deltas_ref = ref[:, c1:c1 + module.c2]

    assert scores.shape == (N, num_classes + 2), scores.shape
    assert deltas.shape == (N, (num_classes + 1) * 4), deltas.shape
    assert scores.dtype == jnp.float32 and deltas.dtype == jnp.float32
    assert bool(jnp.all(jnp.isfinite(scores))) and bool(jnp.all(jnp.isfinite(deltas)))
    assert jnp.allclose(scores, scores_ref, atol=1e-2, rtol=1e-2)
    assert jnp.allclose(deltas, deltas_ref, atol=1e-2, rtol=1e-2)

    print("KERNEL_OK")
</pallas_src>

<mosaic_0001>
module attributes {stable_mosaic.version = 11 : i64} {
  func.func @fused_fast_rcnn_kernel(%arg0: i32, %arg1: memref<500x64xf32, #tpu.memory_space<vmem>>, %arg2: memref<64x128xbf16, #tpu.memory_space<vmem>>, %arg3: memref<1x128xf32, #tpu.memory_space<vmem>>, %arg4: memref<500x128xbf16, #tpu.memory_space<vmem>>) attributes {dimension_semantics = [#tpu.dimension_semantics<parallel>], iteration_bounds = array<i64: 1>, scalar_prefetch = 0 : i64, scratch_operands = 0 : i64, tpu.core_type = #tpu.core_type<tc>, window_params = [{transform_indices = @transform_0, window_bounds = array<i64: 500, 64>}, {pipeline_mode = #tpu.pipeline_mode<synchronous>, transform_indices = @transform_1, window_bounds = array<i64: 64, 128>}, {pipeline_mode = #tpu.pipeline_mode<synchronous>, transform_indices = @transform_2, window_bounds = array<i64: 1, 128>}, {transform_indices = @transform_3, window_bounds = array<i64: 500, 128>}]} {
    %c0 = arith.constant 0 : index
    %c0_0 = arith.constant 0 : index
    %0 = vector.load %arg1[%c0, %c0_0] : memref<500x64xf32, #tpu.memory_space<vmem>>, vector<500x64xf32>
    %1 = arith.truncf %0 : vector<500x64xf32> to vector<500x64xbf16>
    %c0_1 = arith.constant 0 : index
    %c0_2 = arith.constant 0 : index
    %2 = vector.load %arg2[%c0_1, %c0_2] : memref<64x128xbf16, #tpu.memory_space<vmem>>, vector<64x128xbf16>
    %cst = arith.constant dense<0.000000e+00> : vector<500x128xf32>
    %3 = tpu.matmul %1, %2, %cst {dimension_numbers = #tpu.dot_dimension_numbers<[1], [0], [0], [1], [0, 0, 1, 1], [], []>} : vector<500x64xbf16>, vector<64x128xbf16>, vector<500x128xf32> -> vector<500x128xf32>
    %c0_3 = arith.constant 0 : index
    %c0_4 = arith.constant 0 : index
    %4 = vector.load %arg3[%c0_3, %c0_4] : memref<1x128xf32, #tpu.memory_space<vmem>>, vector<1x128xf32>
    %5 = vector.broadcast %4 : vector<1x128xf32> to vector<500x128xf32>
    %6 = arith.addf %3, %5 : vector<500x128xf32>
    %7 = arith.truncf %6 : vector<500x128xf32> to vector<500x128xbf16>
    %c0_5 = arith.constant 0 : index
    %c0_6 = arith.constant 0 : index
    %8 = vector.load %arg4[%c0_5, %c0_6] : memref<500x128xbf16, #tpu.memory_space<vmem>>, vector<500x128xbf16>
    tpu.vector_store %arg4[%c0_5, %c0_6], %7 {strides = array<i32>} : memref<500x128xbf16, #tpu.memory_space<vmem>>, vector<500x128xbf16>,
    return
  }
  func.func @transform_0(%arg0: i32) -> (i32, i32) {
    %c0_i32 = arith.constant 0 : i32
    %c0_i32_0 = arith.constant 0 : i32
    return %arg0, %c0_i32 : i32, i32
  }
  func.func @transform_1(%arg0: i32) -> (i32, i32) {
    %c0_i32 = arith.constant 0 : i32
    %c0_i32_0 = arith.constant 0 : i32
    %c0_i32_1 = arith.constant 0 : i32
    return %c0_i32, %c0_i32_0 : i32, i32
  }
  func.func @transform_2(%arg0: i32) -> (i32, i32) {
    %c0_i32 = arith.constant 0 : i32
    %c0_i32_0 = arith.constant 0 : i32
    %c0_i32_1 = arith.constant 0 : i32
    return %c0_i32, %c0_i32_0 : i32, i32
  }
  func.func @transform_3(%arg0: i32) -> (i32, i32) {
    %c0_i32 = arith.constant 0 : i32
    %c0_i32_0 = arith.constant 0 : i32
    return %arg0, %c0_i32 : i32, i32
  }
}

module attributes {stable_mosaic.version = 11 : i64} {
  func.func @fused_fast_rcnn_kernel(%arg0: i32, %arg1: memref<500x64xf32, #tpu.memory_space<vmem>>, %arg2: memref<64x128xbf16, #tpu.memory_space<vmem>>, %arg3: memref<1x128xf32, #tpu.memory_space<vmem>>, %arg4: memref<500x128xbf16, #tpu.memory_space<vmem>>) attributes {dimension_semantics = [#tpu.dimension_semantics<parallel>], iteration_bounds = array<i64: 1>, scalar_prefetch = 0 : i64, scratch_operands = 0 : i64, tpu.core_type = #tpu.core_type<tc>, window_params = [{transform_indices = @transform_0, window_bounds = array<i64: 500, 64>}, {pipeline_mode = #tpu.pipeline_mode<synchronous>, transform_indices = @transform_1, window_bounds = array<i64: 64, 128>}, {pipeline_mode = #tpu.pipeline_mode<synchronous>, transform_indices = @transform_2, window_bounds = array<i64: 1, 128>}, {transform_indices = @transform_3, window_bounds = array<i64: 500, 128>}]} {
    %c0 = arith.constant 0 : index
    %c0_0 = arith.constant 0 : index
    %0 = vector.load %arg1[%c0, %c0_0] : memref<500x64xf32, #tpu.memory_space<vmem>>, vector<500x64xf32>
    %1 = arith.truncf %0 : vector<500x64xf32> to vector<500x64xbf16>
    %c0_1 = arith.constant 0 : index
    %c0_2 = arith.constant 0 : index
    %2 = vector.load %arg2[%c0_1, %c0_2] : memref<64x128xbf16, #tpu.memory_space<vmem>>, vector<64x128xbf16>
    %cst = arith.constant dense<0.000000e+00> : vector<500x128xf32>
    %3 = tpu.matmul %1, %2, %cst {dimension_numbers = #tpu.dot_dimension_numbers<[1], [0], [0], [1], [0, 0, 1, 1], [], []>} : vector<500x64xbf16>, vector<64x128xbf16>, vector<500x128xf32> -> vector<500x128xf32>
    %c0_3 = arith.constant 0 : index
    %c0_4 = arith.constant 0 : index
    %4 = vector.load %arg3[%c0_3, %c0_4] : memref<1x128xf32, #tpu.memory_space<vmem>>, vector<1x128xf32>
    %5 = vector.broadcast %4 : vector<1x128xf32> to vector<500x128xf32>
    %6 = arith.addf %3, %5 : vector<500x128xf32>
    %7 = arith.truncf %6 : vector<500x128xf32> to vector<500x128xbf16>
    %c0_5 = arith.constant 0 : index
    %c0_6 = arith.constant 0 : index
    %8 = vector.load %arg4[%c0_5, %c0_6] : memref<500x128xbf16, #tpu.memory_space<vmem>>, vector<500x128xbf16>
    tpu.vector_store %arg4[%c0_5, %c0_6], %7 {strides = array<i32>} : memref<500x128xbf16, #tpu.memory_space<vmem>>, vector<500x128xbf16>,
    return
  }
  func.func @transform_0(%arg0: i32) -> (i32, i32) {
    %c0_i32 = arith.constant 0 : i32
    %c0_i32_0 = arith.constant 0 : i32
    return %arg0, %c0_i32 : i32, i32
  }
  func.func @transform_1(%arg0: i32) -> (i32, i32) {
    %c0_i32 = arith.constant 0 : i32
    %c0_i32_0 = arith.constant 0 : i32
    %c0_i32_1 = arith.constant 0 : i32
    return %c0_i32, %c0_i32_0 : i32, i32
  }
  func.func @transform_2(%arg0: i32) -> (i32, i32) {
    %c0_i32 = arith.constant 0 : i32
    %c0_i32_0 = arith.constant 0 : i32
    %c0_i32_1 = arith.constant 0 : i32
    return %c0_i32, %c0_i32_0 : i32, i32
  }
  func.func @transform_3(%arg0: i32) -> (i32, i32) {
    %c0_i32 = arith.constant 0 : i32
    %c0_i32_0 = arith.constant 0 : i32
    return %arg0, %c0_i32 : i32, i32
  }
}

</mosaic_0001>

<llo_original>
// kernel: tpu_custom_call.1
$region0: #{tpu_custom_call.1}
  #allocation0 [shape = 'u32[]', space=smem, size = 0x4, offset = 0x4, fixed_abs, tag = 'smem constant byte address 0x4 - core index']
  #allocation1 [shape = 'u32[144,128]{1,0:T(1,128)}', space=vmem, size = 0x12000, scoped, tag = 'internal scratch']
  %s0 = inlined_call_operand.vmem [shape: f32[500,64], index: 0, kind: input, shape index: {}]
  %s1 = inlined_call_operand.vmem [shape: bf16[64,128], index: 1, kind: input, shape index: {}]
  %s2 = inlined_call_operand.vmem [shape: f32[1,128], index: 2, kind: input, shape index: {}]
  %s3 = inlined_call_operand.hbm [shape: bf16[500,128], index: 3, kind: output, shape index: {}]
  %s4 = sld [smem:[#allocation0]]
  $region22: #{tpu_custom_call.1} parent=0
    _
  %s6 = ssub.s32 1, %s4
  %s7 = scalar_select 0, %s6, %s4
  $region1: #{tpu_custom_call.1} parent=0
    #allocation2 [shape = 'u8[129024]{0}', space=vmem, size = 0x1f800, scoped, tag = 'output window, operand 0, single buffered']
    #allocation3 [shape = 's32[1]{0}', space=sflag, size = 0x4, scoped, tag = 'scoped memory for tpu_custom_call.1']
    %8 = vsyncpa [#allocation3], 0
    // Predicated region
    $region2: #{tpu_custom_call.1} parent=1 // pred_check
      _
    $region3: #{tpu_custom_call.1} parent=1 // pred_check_branch
      %10 = sbr.rel (0) target = $region5
    $region4: #{tpu_custom_call.1} parent=1 // pred_region
      _
    $region5: #{tpu_custom_call.1} parent=1 // pred_fallthru
      _
    // Predicated region
    $region6: #{tpu_custom_call.1} parent=1 // pred_check
      _
    $region7: #{tpu_custom_call.1} parent=1 // pred_check_branch
      %12 = sbr.rel (0) target = $region9
    $region8: #{tpu_custom_call.1} parent=1 // pred_region
      _
    $region9: #{tpu_custom_call.1} parent=1 // pred_fallthru
      _
    // Predicated region
    $region10: #{tpu_custom_call.1} parent=1 // pred_check
      _
    $region11: #{tpu_custom_call.1} parent=1 // pred_check_branch
      %14 = sbr.rel (0) target = $region13
    $region12: #{tpu_custom_call.1} parent=1 // pred_region
      _
    $region13: #{tpu_custom_call.1} parent=1 // pred_fallthru
      _
    %v16 = vld [vmem:[%s0] sm:$0xff]
    %v17 = vld [vmem:[%s0 + $0x8] sm:$0xff]
    %v18 = vld [vmem:[%s0 + $0x10] sm:$0xff]
    %v19 = vld [vmem:[%s0 + $0x18] sm:$0xff]
    %v20 = vld [vmem:[%s0 + $0x20] sm:$0xff]
    %v21 = vld [vmem:[%s0 + $0x28] sm:$0xff]
    %v22 = vld [vmem:[%s0 + $0x30] sm:$0xff]
    %v23 = vld [vmem:[%s0 + $0x38] sm:$0xff]
    %v24 = vld [vmem:[%s0 + $0x40] sm:$0xff]
    %v25 = vld [vmem:[%s0 + $0x48] sm:$0xff]
    %v26 = vld [vmem:[%s0 + $0x50] sm:$0xff]
    %v27 = vld [vmem:[%s0 + $0x58] sm:$0xff]
    %v28 = vld [vmem:[%s0 + $0x60] sm:$0xff]
    %v29 = vld [vmem:[%s0 + $0x68] sm:$0xff]
    %v30 = vld [vmem:[%s0 + $0x70] sm:$0xff]
    %v31 = vld [vmem:[%s0 + $0x78] sm:$0xff]
    %v32 = vld [vmem:[%s0 + $0x80] sm:$0xff]
    %v33 = vld [vmem:[%s0 + $0x88] sm:$0xff]
    %v34 = vld [vmem:[%s0 + $0x90] sm:$0xff]
    %v35 = vld [vmem:[%s0 + $0x98] sm:$0xff]
    %v36 = vld [vmem:[%s0 + $0xa0] sm:$0xff]
    %v37 = vld [vmem:[%s0 + $0xa8] sm:$0xff]
    %v38 = vld [vmem:[%s0 + $0xb0] sm:$0xff]
    %v39 = vld [vmem:[%s0 + $0xb8] sm:$0xff]
    %v40 = vld [vmem:[%s0 + $0xc0] sm:$0xff]
    %v41 = vld [vmem:[%s0 + $0xc8] sm:$0xff]
    %v42 = vld [vmem:[%s0 + $0xd0] sm:$0xff]
    %v43 = vld [vmem:[%s0 + $0xd8] sm:$0xff]
    %v44 = vld [vmem:[%s0 + $0xe0] sm:$0xff]
    %v45 = vld [vmem:[%s0 + $0xe8] sm:$0xff]
    %v46 = vld [vmem:[%s0 + $0xf0] sm:$0xff]
    %v47 = vld [vmem:[%s0 + $0xf8] sm:$0xff]
    %v48 = vld [vmem:[%s0 + $0x100] sm:$0xff]
    %v49 = vld [vmem:[%s0 + $0x108] sm:$0xff]
    %v50 = vld [vmem:[%s0 + $0x110] sm:$0xff]
    %v51 = vld [vmem:[%s0 + $0x118] sm:$0xff]
    %v52 = vld [vmem:[%s0 + $0x120] sm:$0xff]
    %v53 = vld [vmem:[%s0 + $0x128] sm:$0xff]
    %v54 = vld [vmem:[%s0 + $0x130] sm:$0xff]
    %v55 = vld [vmem:[%s0 + $0x138] sm:$0xff]
    %v56 = vld [vmem:[%s0 + $0x140] sm:$0xff]
    %v57 = vld [vmem:[%s0 + $0x148] sm:$0xff]
    %v58 = vld [vmem:[%s0 + $0x150] sm:$0xff]
    %v59 = vld [vmem:[%s0 + $0x158] sm:$0xff]
    %v60 = vld [vmem:[%s0 + $0x160] sm:$0xff]
    %v61 = vld [vmem:[%s0 + $0x168] sm:$0xff]
    %v62 = vld [vmem:[%s0 + $0x170] sm:$0xff]
    %v63 = vld [vmem:[%s0 + $0x178] sm:$0xff]
    %v64 = vld [vmem:[%s0 + $0x180] sm:$0xff]
    %v65 = vld [vmem:[%s0 + $0x188] sm:$0xff]
    %v66 = vld [vmem:[%s0 + $0x190] sm:$0xff]
    %v67 = vld [vmem:[%s0 + $0x198] sm:$0xff]
    %v68 = vld [vmem:[%s0 + $0x1a0] sm:$0xff]
    %v69 = vld [vmem:[%s0 + $0x1a8] sm:$0xff]
    %v70 = vld [vmem:[%s0 + $0x1b0] sm:$0xff]
    %v71 = vld [vmem:[%s0 + $0x1b8] sm:$0xff]
    %v72 = vld [vmem:[%s0 + $0x1c0] sm:$0xff]
    %v73 = vld [vmem:[%s0 + $0x1c8] sm:$0xff]
    %v74 = vld [vmem:[%s0 + $0x1d0] sm:$0xff]
    %v75 = vld [vmem:[%s0 + $0x1d8] sm:$0xff]
    %v76 = vld [vmem:[%s0 + $0x1e0] sm:$0xff]
    %v77 = vld [vmem:[%s0 + $0x1e8] sm:$0xff]
    %v78 = vld [vmem:[%s0 + $0x1f0] sm:$0xf]
    %v79 = vpack.c.bf16 %v17, %v16
    %v80 = vpack.c.bf16 %v19, %v18
    %v81 = vpack.c.bf16 %v21, %v20
    %v82 = vpack.c.bf16 %v23, %v22
    %v83 = vpack.c.bf16 %v25, %v24
    %v84 = vpack.c.bf16 %v27, %v26
    %v85 = vpack.c.bf16 %v29, %v28
    %v86 = vpack.c.bf16 %v31, %v30
    %v87 = vpack.c.bf16 %v33, %v32
    %v88 = vpack.c.bf16 %v35, %v34
    %v89 = vpack.c.bf16 %v37, %v36
    %v90 = vpack.c.bf16 %v39, %v38
    %v91 = vpack.c.bf16 %v41, %v40
    %v92 = vpack.c.bf16 %v43, %v42
    %v93 = vpack.c.bf16 %v45, %v44
    %v94 = vpack.c.bf16 %v47, %v46
    %v95 = vpack.c.bf16 %v49, %v48
    %v96 = vpack.c.bf16 %v51, %v50
    %v97 = vpack.c.bf16 %v53, %v52
    %v98 = vpack.c.bf16 %v55, %v54
    %v99 = vpack.c.bf16 %v57, %v56
    %v100 = vpack.c.bf16 %v59, %v58
    %v101 = vpack.c.bf16 %v61, %v60
    %v102 = vpack.c.bf16 %v63, %v62
    %v103 = vpack.c.bf16 %v65, %v64
    %v104 = vpack.c.bf16 %v67, %v66
    %v105 = vpack.c.bf16 %v69, %v68
    %v106 = vpack.c.bf16 %v71, %v70
    %v107 = vpack.c.bf16 %v73, %v72
    %v108 = vpack.c.bf16 %v75, %v74
    %v109 = vpack.c.bf16 %v77, %v76
    %v110 = vpack.c.bf16 %v78, %v78
    %v111 = vld [vmem:[%s1] sm:$0xf]
    %v112 = vld [vmem:[%s1 + $0x4] sm:$0xf]
    %v113 = vld [vmem:[%s1 + $0x8] sm:$0xf]
    %v114 = vld [vmem:[%s1 + $0xc] sm:$0xf]
    %v115 = vld [vmem:[%s1 + $0x10] sm:$0xf]
    %v116 = vld [vmem:[%s1 + $0x14] sm:$0xf]
    %v117 = vld [vmem:[%s1 + $0x18] sm:$0xf]
    %v118 = vld [vmem:[%s1 + $0x1c] sm:$0xf]
    %v119 = vld [vmem:[%s2] sm:$0x1]
    %v121 = vlaneseq
    %v122 = vshrl.u32 %v121, 7
    %v123 = vsub.s32 0, %v122
    %v124 = vrot.slane %v119, %v123
    %v134 = vunpack.c.l.b16 %v111
    %v135 = vunpack.c.l.b16 %v112
    %v136 = vunpack.c.l.b16 %v113
    %v137 = vunpack.c.l.b16 %v114
    %v138 = vunpack.c.l.b16 %v115
    %v139 = vunpack.c.l.b16 %v116
    %v140 = vunpack.c.l.b16 %v117
    %v141 = vunpack.c.l.b16 %v118
    %v142 = vpack.c.b16 %v135, %v134
    %v143 = vpack.c.b16 %v137, %v136
    %v144 = vpack.c.b16 %v139, %v138
    %v145 = vpack.c.b16 %v141, %v140
    %vm150 = vcmask 523264
    %v152 = vsel %vm150, %v79, 0
    %v155 = vsel %vm150, %v80, 0
    %v158 = vsel %vm150, %v81, 0
    %v161 = vsel %vm150, %v82, 0
    %v164 = vsel %vm150, %v83, 0
    %v167 = vsel %vm150, %v84, 0
    %v170 = vsel %vm150, %v85, 0
    %v173 = vsel %vm150, %v86, 0
    %v176 = vsel %vm150, %v87, 0
    %v179 = vsel %vm150, %v88, 0
    %v182 = vsel %vm150, %v89, 0
    %v185 = vsel %vm150, %v90, 0
    %v188 = vsel %vm150, %v91, 0
    %v191 = vsel %vm150, %v92, 0
    %v194 = vsel %vm150, %v93, 0
    %v197 = vsel %vm150, %v94, 0
    %v200 = vsel %vm150, %v95, 0
    %v203 = vsel %vm150, %v96, 0
    %v206 = vsel %vm150, %v97, 0
    %v209 = vsel %vm150, %v98, 0
    %v212 = vsel %vm150, %v99, 0
    %v215 = vsel %vm150, %v100, 0
    %v218 = vsel %vm150, %v101, 0
    %v221 = vsel %vm150, %v102, 0
    %v224 = vsel %vm150, %v103, 0
    %v227 = vsel %vm150, %v104, 0
    %v230 = vsel %vm150, %v105, 0
    %v233 = vsel %vm150, %v106, 0
    %v236 = vsel %vm150, %v107, 0
    %v239 = vsel %vm150, %v108, 0
    %v242 = vsel %vm150, %v109, 0
    %v245 = vsel %vm150, %v110, 0
    %247 = vmatprep.subr.bf16.mxu0 0
    %248 = vmatpush1.bf16.msra.mxu0 0
    %249 = vmatprep.subr.bf16.mxu0 0
    %250 = vmatpush1.bf16.msra.mxu0 0
    %251 = vmatprep.subr.bf16.mxu0 0
    %252 = vmatpush1.bf16.msra.mxu0 0
    %253 = vmatprep.subr.bf16.mxu0 0
    %254 = vmatpush1.bf16.msra.mxu0 0
    %255 = vmatprep.subr.bf16.mxu0 0
    %256 = vmatpush1.bf16.msra.mxu0 %v145
    %257 = vmatprep.subr.bf16.mxu0 0
    %258 = vmatpush1.bf16.msra.mxu0 %v144
    %259 = vmatprep.subr.bf16.mxu0 0
    %260 = vmatpush1.bf16.msra.mxu0 %v143
    %261 = vmatprep.subr.bf16.mxu0 0
    %262 = vmatpush1.bf16.msra.mxu0 %v142
    %263 = vmatprep.subr.bf16.mxu0 0
    %264 = vmatpush2.bf16.msra.mxu0 0
    %265 = vmatprep.subr.bf16.mxu0 0
    %266 = vmatpush2.bf16.msra.mxu0 0
    %267 = vmatprep.subr.bf16.mxu0 0
    %268 = vmatpush2.bf16.msra.mxu0 0
    %269 = vmatprep.subr.bf16.mxu0 0
    %270 = vmatpush2.bf16.msra.mxu0 0
    %271 = vmatprep.subr.bf16.mxu0 0
    %272 = vmatpush2.bf16.msra.mxu0 0
    %273 = vmatprep.subr.bf16.mxu0 0
    %274 = vmatpush2.bf16.msra.mxu0 0
    %275 = vmatprep.subr.bf16.mxu0 0
    %276 = vmatpush2.bf16.msra.mxu0 0
    %277 = vmatprep.subr.bf16.mxu0 0
    %278 = vmatpush2.bf16.msra.mxu0 0
    %279 = vmatprep.mubr.bf16.mxu0 0
    %280 = vmatmul.mubr.bf16.gmra.mxu0 %v152
    %v281 = vpop.f32.mrf.mxu0
    %v282 = vadd.f32 %v124, %v281
    %v283 = vpop.f32.mrf.mxu0
    %v284 = vpop.f32.mrf.mxu0
    %v285 = vadd.f32 %v124, %v284
    %v286 = vpop.f32.mrf.mxu0
    %287 = vmatprep.mubr.bf16.mxu0 0
    %288 = vmatmul.mubr.bf16.gmra.mxu0 %v155
    %v289 = vpop.f32.mrf.mxu0
    %v290 = vadd.f32 %v124, %v289
    %v291 = vpop.f32.mrf.mxu0
    %v292 = vpop.f32.mrf.mxu0
    %v293 = vadd.f32 %v124, %v292
    %v294 = vpop.f32.mrf.mxu0
    %295 = vmatprep.mubr.bf16.mxu0 0
    %296 = vmatmul.mubr.bf16.gmra.mxu0 %v158
    %v297 = vpop.f32.mrf.mxu0
    %v298 = vadd.f32 %v124, %v297
    %v299 = vpop.f32.mrf.mxu0
    %v300 = vpop.f32.mrf.mxu0
    %v301 = vadd.f32 %v124, %v300
    %v302 = vpop.f32.mrf.mxu0
    %303 = vmatprep.mubr.bf16.mxu0 0
    %304 = vmatmul.mubr.bf16.gmra.mxu0 %v161
    %v305 = vpop.f32.mrf.mxu0
    %v306 = vadd.f32 %v124, %v305
    %v307 = vpop.f32.mrf.mxu0
    %v308 = vpop.f32.mrf.mxu0
    %v309 = vadd.f32 %v124, %v308
    %v310 = vpop.f32.mrf.mxu0
    %311 = vmatprep.mubr.bf16.mxu0 0
    %312 = vmatmul.mubr.bf16.gmra.mxu0 %v164
    %v313 = vpop.f32.mrf.mxu0
    %v314 = vadd.f32 %v124, %v313
    %v315 = vpop.f32.mrf.mxu0
    %v316 = vpop.f32.mrf.mxu0
    %v317 = vadd.f32 %v124, %v316
    %v318 = vpop.f32.mrf.mxu0
    %319 = vmatprep.mubr.bf16.mxu0 0
    %320 = vmatmul.mubr.bf16.gmra.mxu0 %v167
    %v321 = vpop.f32.mrf.mxu0
    %v322 = vadd.f32 %v124, %v321
    %v323 = vpop.f32.mrf.mxu0
    %v324 = vpop.f32.mrf.mxu0
    %v325 = vadd.f32 %v124, %v324
    %v326 = vpop.f32.mrf.mxu0
    %327 = vmatprep.mubr.bf16.mxu0 0
    %328 = vmatmul.mubr.bf16.gmra.mxu0 %v170
    %v329 = vpop.f32.mrf.mxu0
    %v330 = vadd.f32 %v124, %v329
    %v331 = vpop.f32.mrf.mxu0
    %v332 = vpop.f32.mrf.mxu0
    %v333 = vadd.f32 %v124, %v332
    %v334 = vpop.f32.mrf.mxu0
    %335 = vmatprep.mubr.bf16.mxu0 0
    %336 = vmatmul.mubr.bf16.gmra.mxu0 %v173
    %v337 = vpop.f32.mrf.mxu0
    %v338 = vadd.f32 %v124, %v337
    %v339 = vpop.f32.mrf.mxu0
    %v340 = vpop.f32.mrf.mxu0
    %v341 = vadd.f32 %v124, %v340
    %v342 = vpop.f32.mrf.mxu0
    %343 = vmatprep.mubr.bf16.mxu0 0
    %344 = vmatmul.mubr.bf16.gmra.mxu0 %v176
    %v345 = vpop.f32.mrf.mxu0
    %v346 = vadd.f32 %v124, %v345
    %v347 = vpop.f32.mrf.mxu0
    %v348 = vpop.f32.mrf.mxu0
    %v349 = vadd.f32 %v124, %v348
    %v350 = vpop.f32.mrf.mxu0
    %351 = vmatprep.mubr.bf16.mxu0 0
    %352 = vmatmul.mubr.bf16.gmra.mxu0 %v179
    %v353 = vpop.f32.mrf.mxu0
    %v354 = vadd.f32 %v124, %v353
    %v355 = vpop.f32.mrf.mxu0
    %v356 = vpop.f32.mrf.mxu0
    %v357 = vadd.f32 %v124, %v356
    %v358 = vpop.f32.mrf.mxu0
    %359 = vmatprep.mubr.bf16.mxu0 0
    %360 = vmatmul.mubr.bf16.gmra.mxu0 %v182
    %v361 = vpop.f32.mrf.mxu0
    %v362 = vadd.f32 %v124, %v361
    %v363 = vpop.f32.mrf.mxu0
    %v364 = vpop.f32.mrf.mxu0
    %v365 = vadd.f32 %v124, %v364
    %v366 = vpop.f32.mrf.mxu0
    %367 = vmatprep.mubr.bf16.mxu0 0
    %368 = vmatmul.mubr.bf16.gmra.mxu0 %v185
    %v369 = vpop.f32.mrf.mxu0
    %v370 = vadd.f32 %v124, %v369
    %v371 = vpop.f32.mrf.mxu0
    %v372 = vpop.f32.mrf.mxu0
    %v373 = vadd.f32 %v124, %v372
    %v374 = vpop.f32.mrf.mxu0
    %375 = vmatprep.mubr.bf16.mxu0 0
    %376 = vmatmul.mubr.bf16.gmra.mxu0 %v188
    %v377 = vpop.f32.mrf.mxu0
    %v378 = vadd.f32 %v124, %v377
    %v379 = vpop.f32.mrf.mxu0
    %v380 = vpop.f32.mrf.mxu0
    %v381 = vadd.f32 %v124, %v380
    %v382 = vpop.f32.mrf.mxu0
    %383 = vmatprep.mubr.bf16.mxu0 0
    %384 = vmatmul.mubr.bf16.gmra.mxu0 %v191
    %v385 = vpop.f32.mrf.mxu0
    %v386 = vadd.f32 %v124, %v385
    %v387 = vpop.f32.mrf.mxu0
    %v388 = vpop.f32.mrf.mxu0
    %v389 = vadd.f32 %v124, %v388
    %v390 = vpop.f32.mrf.mxu0
    %391 = vmatprep.mubr.bf16.mxu0 0
    %392 = vmatmul.mubr.bf16.gmra.mxu0 %v194
    %v393 = vpop.f32.mrf.mxu0
    %v394 = vadd.f32 %v124, %v393
    %v395 = vpop.f32.mrf.mxu0
    %v396 = vpop.f32.mrf.mxu0
    %v397 = vadd.f32 %v124, %v396
    %v398 = vpop.f32.mrf.mxu0
    %399 = vmatprep.mubr.bf16.mxu0 0
    %400 = vmatmul.mubr.bf16.gmra.mxu0 %v197
    %v401 = vpop.f32.mrf.mxu0
    %v402 = vadd.f32 %v124, %v401
    %v403 = vpop.f32.mrf.mxu0
    %v404 = vpop.f32.mrf.mxu0
    %v405 = vadd.f32 %v124, %v404
    %v406 = vpop.f32.mrf.mxu0
    %407 = vmatprep.mubr.bf16.mxu0 0
    %408 = vmatmul.mubr.bf16.gmra.mxu0 %v200
    %v409 = vpop.f32.mrf.mxu0
    %v410 = vadd.f32 %v124, %v409
    %v411 = vpop.f32.mrf.mxu0
    %v412 = vpop.f32.mrf.mxu0
    %v413 = vadd.f32 %v124, %v412
    %v414 = vpop.f32.mrf.mxu0
    %415 = vmatprep.mubr.bf16.mxu0 0
    %416 = vmatmul.mubr.bf16.gmra.mxu0 %v203
    %v417 = vpop.f32.mrf.mxu0
    %v418 = vadd.f32 %v124, %v417
    %v419 = vpop.f32.mrf.mxu0
    %v420 = vpop.f32.mrf.mxu0
    %v421 = vadd.f32 %v124, %v420
    %v422 = vpop.f32.mrf.mxu0
    %423 = vmatprep.mubr.bf16.mxu0 0
    %424 = vmatmul.mubr.bf16.gmra.mxu0 %v206
    %v425 = vpop.f32.mrf.mxu0
    %v426 = vadd.f32 %v124, %v425
    %v427 = vpop.f32.mrf.mxu0
    %v428 = vpop.f32.mrf.mxu0
    %v429 = vadd.f32 %v124, %v428
    %v430 = vpop.f32.mrf.mxu0
    %431 = vmatprep.mubr.bf16.mxu0 0
    %432 = vmatmul.mubr.bf16.gmra.mxu0 %v209
    %v433 = vpop.f32.mrf.mxu0
    %v434 = vadd.f32 %v124, %v433
    %v435 = vpop.f32.mrf.mxu0
    %v436 = vpop.f32.mrf.mxu0
    %v437 = vadd.f32 %v124, %v436
    %v438 = vpop.f32.mrf.mxu0
    %439 = vmatprep.mubr.bf16.mxu0 0
    %440 = vmatmul.mubr.bf16.gmra.mxu0 %v212
    %v441 = vpop.f32.mrf.mxu0
    %v442 = vadd.f32 %v124, %v441
    %v443 = vpop.f32.mrf.mxu0
    %v444 = vpop.f32.mrf.mxu0
    %v445 = vadd.f32 %v124, %v444
    %v446 = vpop.f32.mrf.mxu0
    %447 = vmatprep.mubr.bf16.mxu0 0
    %448 = vmatmul.mubr.bf16.gmra.mxu0 %v215
    %v449 = vpop.f32.mrf.mxu0
    %v450 = vadd.f32 %v124, %v449
    %v451 = vpop.f32.mrf.mxu0
    %v452 = vpop.f32.mrf.mxu0
    %v453 = vadd.f32 %v124, %v452
    %v454 = vpop.f32.mrf.mxu0
    %455 = vmatprep.mubr.bf16.mxu0 0
    %456 = vmatmul.mubr.bf16.gmra.mxu0 %v218
    %v457 = vpop.f32.mrf.mxu0
    %v458 = vadd.f32 %v124, %v457
    %v459 = vpop.f32.mrf.mxu0
    %v460 = vpop.f32.mrf.mxu0
    %v461 = vadd.f32 %v124, %v460
    %v462 = vpop.f32.mrf.mxu0
    %463 = vmatprep.mubr.bf16.mxu0 0
    %464 = vmatmul.mubr.bf16.gmra.mxu0 %v221
    %v465 = vpop.f32.mrf.mxu0
    %v466 = vadd.f32 %v124, %v465
    %v467 = vpop.f32.mrf.mxu0
    %v468 = vpop.f32.mrf.mxu0
    %v469 = vadd.f32 %v124, %v468
    %v470 = vpop.f32.mrf.mxu0
    %471 = vmatprep.mubr.bf16.mxu0 0
    %472 = vmatmul.mubr.bf16.gmra.mxu0 %v224
    %v473 = vpop.f32.mrf.mxu0
    %v474 = vadd.f32 %v124, %v473
    %v475 = vpop.f32.mrf.mxu0
    %v476 = vpop.f32.mrf.mxu0
    %v477 = vadd.f32 %v124, %v476
    %v478 = vpop.f32.mrf.mxu0
    %479 = vmatprep.mubr.bf16.mxu0 0
    %480 = vmatmul.mubr.bf16.gmra.mxu0 %v227
    %v481 = vpop.f32.mrf.mxu0
    %v482 = vadd.f32 %v124, %v481
    %v483 = vpop.f32.mrf.mxu0
    %v484 = vpop.f32.mrf.mxu0
    %v485 = vadd.f32 %v124, %v484
    %v486 = vpop.f32.mrf.mxu0
    %487 = vmatprep.mubr.bf16.mxu0 0
    %488 = vmatmul.mubr.bf16.gmra.mxu0 %v230
    %v489 = vpop.f32.mrf.mxu0
    %v490 = vadd.f32 %v124, %v489
    %v491 = vpop.f32.mrf.mxu0
    %v492 = vpop.f32.mrf.mxu0
    %v493 = vadd.f32 %v124, %v492
    %v494 = vpop.f32.mrf.mxu0
    %495 = vmatprep.mubr.bf16.mxu0 0
    %496 = vmatmul.mubr.bf16.gmra.mxu0 %v233
    %v497 = vpop.f32.mrf.mxu0
    %v498 = vadd.f32 %v124, %v497
    %v499 = vpop.f32.mrf.mxu0
    %v500 = vpop.f32.mrf.mxu0
    %v501 = vadd.f32 %v124, %v500
    %v502 = vpop.f32.mrf.mxu0
    %503 = vmatprep.mubr.bf16.mxu0 0
    %504 = vmatmul.mubr.bf16.gmra.mxu0 %v236
    %v505 = vpop.f32.mrf.mxu0
    %v506 = vadd.f32 %v124, %v505
    %v507 = vpop.f32.mrf.mxu0
    %v508 = vpop.f32.mrf.mxu0
    %v509 = vadd.f32 %v124, %v508
    %v510 = vpop.f32.mrf.mxu0
    %511 = vmatprep.mubr.bf16.mxu0 0
    %512 = vmatmul.mubr.bf16.gmra.mxu0 %v239
    %v513 = vpop.f32.mrf.mxu0
    %v514 = vadd.f32 %v124, %v513
    %v515 = vpop.f32.mrf.mxu0
    %v516 = vpop.f32.mrf.mxu0
    %v517 = vadd.f32 %v124, %v516
    %v518 = vpop.f32.mrf.mxu0
    %519 = vmatprep.mubr.bf16.mxu0 0
    %520 = vmatmul.mubr.bf16.gmra.mxu0 %v242
    %v521 = vpop.f32.mrf.mxu0
    %v522 = vadd.f32 %v124, %v521
    %v523 = vpop.f32.mrf.mxu0
    %v524 = vpop.f32.mrf.mxu0
    %v525 = vadd.f32 %v124, %v524
    %v526 = vpop.f32.mrf.mxu0
    %527 = vmatprep.mubr.bf16.mxu0 0
    %528 = vmatmul.mubr.bf16.gmra.mxu0 %v245
    %v529 = vpop.f32.mrf.mxu0
    %v530 = vadd.f32 %v124, %v529
    %v531 = vpop.f32.mrf.mxu0
    %v532 = vpop.f32.mrf.mxu0
    %v533 = vpop.f32.mrf.mxu0
    %534 = vdwg.mxu0
    %v535 = vpack.c.bf16 %v285, %v282
    %v536 = vpack.c.bf16 %v293, %v290
    %v537 = vpack.c.bf16 %v301, %v298
    %v538 = vpack.c.bf16 %v309, %v306
    %v539 = vpack.c.bf16 %v317, %v314
    %v540 = vpack.c.bf16 %v325, %v322
    %v541 = vpack.c.bf16 %v333, %v330
    %v542 = vpack.c.bf16 %v341, %v338
    %v543 = vpack.c.bf16 %v349, %v346
    %v544 = vpack.c.bf16 %v357, %v354
    %v545 = vpack.c.bf16 %v365, %v362
    %v546 = vpack.c.bf16 %v373, %v370
    %v547 = vpack.c.bf16 %v381, %v378
    %v548 = vpack.c.bf16 %v389, %v386
    %v549 = vpack.c.bf16 %v397, %v394
    %v550 = vpack.c.bf16 %v405, %v402
    %v551 = vpack.c.bf16 %v413, %v410
    %v552 = vpack.c.bf16 %v421, %v418
    %v553 = vpack.c.bf16 %v429, %v426
    %v554 = vpack.c.bf16 %v437, %v434
    %v555 = vpack.c.bf16 %v445, %v442
    %v556 = vpack.c.bf16 %v453, %v450
    %v557 = vpack.c.bf16 %v461, %v458
    %v558 = vpack.c.bf16 %v469, %v466
    %v559 = vpack.c.bf16 %v477, %v474
    %v560 = vpack.c.bf16 %v485, %v482
    %v561 = vpack.c.bf16 %v493, %v490
    %v562 = vpack.c.bf16 %v501, %v498
    %v563 = vpack.c.bf16 %v509, %v506
    %v564 = vpack.c.bf16 %v517, %v514
    %v565 = vpack.c.bf16 %v525, %v522
    %v566 = vpack.c.bf16 %v530, %v530
    %v599 = vunpack.c.l.b16 %v535
    %v600 = vunpack.c.h.b16 %v535
    %v601 = vunpack.c.l.b16 %v536
    %v602 = vunpack.c.h.b16 %v536
    %v603 = vunpack.c.l.b16 %v537
    %v604 = vunpack.c.h.b16 %v537
    %v605 = vunpack.c.l.b16 %v538
    %v606 = vunpack.c.h.b16 %v538
    %v607 = vunpack.c.l.b16 %v539
    %v608 = vunpack.c.h.b16 %v539
    %v609 = vunpack.c.l.b16 %v540
    %v610 = vunpack.c.h.b16 %v540
    %v611 = vunpack.c.l.b16 %v541
    %v612 = vunpack.c.h.b16 %v541
    %v613 = vunpack.c.l.b16 %v542
    %v614 = vunpack.c.h.b16 %v542
    %v615 = vunpack.c.l.b16 %v543
    %v616 = vunpack.c.h.b16 %v543
    %v617 = vunpack.c.l.b16 %v544
    %v618 = vunpack.c.h.b16 %v544
    %v619 = vunpack.c.l.b16 %v545
    %v620 = vunpack.c.h.b16 %v545
    %v621 = vunpack.c.l.b16 %v546
    %v622 = vunpack.c.h.b16 %v546
    %v623 = vunpack.c.l.b16 %v547
    %v624 = vunpack.c.h.b16 %v547
    %v625 = vunpack.c.l.b16 %v548
    %v626 = vunpack.c.h.b16 %v548
    %v627 = vunpack.c.l.b16 %v549
    %v628 = vunpack.c.h.b16 %v549
    %v629 = vunpack.c.l.b16 %v550
    %v630 = vunpack.c.h.b16 %v550
    %v631 = vunpack.c.l.b16 %v551
    %v632 = vunpack.c.h.b16 %v551
    %v633 = vunpack.c.l.b16 %v552
    %v634 = vunpack.c.h.b16 %v552
    %v635 = vunpack.c.l.b16 %v553
    %v636 = vunpack.c.h.b16 %v553
    %v637 = vunpack.c.l.b16 %v554
    %v638 = vunpack.c.h.b16 %v554
    %v639 = vunpack.c.l.b16 %v555
    %v640 = vunpack.c.h.b16 %v555
    %v641 = vunpack.c.l.b16 %v556
    %v642 = vunpack.c.h.b16 %v556
    %v643 = vunpack.c.l.b16 %v557
    %v644 = vunpack.c.h.b16 %v557
    %v645 = vunpack.c.l.b16 %v558
    %v646 = vunpack.c.h.b16 %v558
    %v647 = vunpack.c.l.b16 %v559
    %v648 = vunpack.c.h.b16 %v559
    %v649 = vunpack.c.l.b16 %v560
    %v650 = vunpack.c.h.b16 %v560
    %v651 = vunpack.c.l.b16 %v561
    %v652 = vunpack.c.h.b16 %v561
    %v653 = vunpack.c.l.b16 %v562
    %v654 = vunpack.c.h.b16 %v562
    %v655 = vunpack.c.l.b16 %v563
    %v656 = vunpack.c.h.b16 %v563
    %v657 = vunpack.c.l.b16 %v564
    %v658 = vunpack.c.h.b16 %v564
    %v659 = vunpack.c.l.b16 %v565
    %v660 = vunpack.c.h.b16 %v565
    %v661 = vunpack.c.l.b16 %v566
    %v662 = vpack.c.b16 %v599, %v599
    %v663 = vpack.c.b16 %v600, %v600
    %v664 = vpack.c.b16 %v601, %v601
    %v665 = vpack.c.b16 %v602, %v602
    %v666 = vpack.c.b16 %v603, %v603
    %v667 = vpack.c.b16 %v604, %v604
    %v668 = vpack.c.b16 %v605, %v605
    %v669 = vpack.c.b16 %v606, %v606
    %v670 = vpack.c.b16 %v607, %v607
    %v671 = vpack.c.b16 %v608, %v608
    %v672 = vpack.c.b16 %v609, %v609
    %v673 = vpack.c.b16 %v610, %v610
    %v674 = vpack.c.b16 %v611, %v611
    %v675 = vpack.c.b16 %v612, %v612
    %v676 = vpack.c.b16 %v613, %v613
    %v677 = vpack.c.b16 %v614, %v614
    %v678 = vpack.c.b16 %v615, %v615
    %v679 = vpack.c.b16 %v616, %v616
    %v680 = vpack.c.b16 %v617, %v617
    %v681 = vpack.c.b16 %v618, %v618
    %v682 = vpack.c.b16 %v619, %v619
    %v683 = vpack.c.b16 %v620, %v620
    %v684 = vpack.c.b16 %v621, %v621
    %v685 = vpack.c.b16 %v622, %v622
    %v686 = vpack.c.b16 %v623, %v623
    %v687 = vpack.c.b16 %v624, %v624
    %v688 = vpack.c.b16 %v625, %v625
    %v689 = vpack.c.b16 %v626, %v626
    %v690 = vpack.c.b16 %v627, %v627
    %v691 = vpack.c.b16 %v628, %v628
    %v692 = vpack.c.b16 %v629, %v629
    %v693 = vpack.c.b16 %v630, %v630
    %v694 = vpack.c.b16 %v631, %v631
    %v695 = vpack.c.b16 %v632, %v632
    %v696 = vpack.c.b16 %v633, %v633
    %v697 = vpack.c.b16 %v634, %v634
    %v698 = vpack.c.b16 %v635, %v635
    %v699 = vpack.c.b16 %v636, %v636
    %v700 = vpack.c.b16 %v637, %v637
    %v701 = vpack.c.b16 %v638, %v638
    %v702 = vpack.c.b16 %v639, %v639
    %v703 = vpack.c.b16 %v640, %v640
    %v704 = vpack.c.b16 %v641, %v641
    %v705 = vpack.c.b16 %v642, %v642
    %v706 = vpack.c.b16 %v643, %v643
    %v707 = vpack.c.b16 %v644, %v644
    %v708 = vpack.c.b16 %v645, %v645
    %v709 = vpack.c.b16 %v646, %v646
    %v710 = vpack.c.b16 %v647, %v647
    %v711 = vpack.c.b16 %v648, %v648
    %v712 = vpack.c.b16 %v649, %v649
    %v713 = vpack.c.b16 %v650, %v650
    %v714 = vpack.c.b16 %v651, %v651
    %v715 = vpack.c.b16 %v652, %v652
    %v716 = vpack.c.b16 %v653, %v653
    %v717 = vpack.c.b16 %v654, %v654
    %v718 = vpack.c.b16 %v655, %v655
    %v719 = vpack.c.b16 %v656, %v656
    %v720 = vpack.c.b16 %v657, %v657
    %v721 = vpack.c.b16 %v658, %v658
    %v722 = vpack.c.b16 %v659, %v659
    %v723 = vpack.c.b16 %v660, %v660
    %v724 = vpack.c.b16 %v661, %v661
    %788 = vst [vmem:[#allocation2] sm:$0xf] %v662
    %789 = vst [vmem:[#allocation2 + $0x4] sm:$0xf] %v663
    %790 = vst [vmem:[#allocation2 + $0x8] sm:$0xf] %v664
    %791 = vst [vmem:[#allocation2 + $0xc] sm:$0xf] %v665
    %792 = vst [vmem:[#allocation2 + $0x10] sm:$0xf] %v666
    %793 = vst [vmem:[#allocation2 + $0x14] sm:$0xf] %v667
    %794 = vst [vmem:[#allocation2 + $0x18] sm:$0xf] %v668
    %795 = vst [vmem:[#allocation2 + $0x1c] sm:$0xf] %v669
    %796 = vst [vmem:[#allocation2 + $0x20] sm:$0xf] %v670
    %797 = vst [vmem:[#allocation2 + $0x24] sm:$0xf] %v671
    %798 = vst [vmem:[#allocation2 + $0x28] sm:$0xf] %v672
    %799 = vst [vmem:[#allocation2 + $0x2c] sm:$0xf] %v673
    %800 = vst [vmem:[#allocation2 + $0x30] sm:$0xf] %v674
    %801 = vst [vmem:[#allocation2 + $0x34] sm:$0xf] %v675
    %802 = vst [vmem:[#allocation2 + $0x38] sm:$0xf] %v676
    %803 = vst [vmem:[#allocation2 + $0x3c] sm:$0xf] %v677
    %804 = vst [vmem:[#allocation2 + $0x40] sm:$0xf] %v678
    %805 = vst [vmem:[#allocation2 + $0x44] sm:$0xf] %v679
    %806 = vst [vmem:[#allocation2 + $0x48] sm:$0xf] %v680
    %807 = vst [vmem:[#allocation2 + $0x4c] sm:$0xf] %v681
    %808 = vst [vmem:[#allocation2 + $0x50] sm:$0xf] %v682
    %809 = vst [vmem:[#allocation2 + $0x54] sm:$0xf] %v683
    %810 = vst [vmem:[#allocation2 + $0x58] sm:$0xf] %v684
    %811 = vst [vmem:[#allocation2 + $0x5c] sm:$0xf] %v685
    %812 = vst [vmem:[#allocation2 + $0x60] sm:$0xf] %v686
    %813 = vst [vmem:[#allocation2 + $0x64] sm:$0xf] %v687
    %814 = vst [vmem:[#allocation2 + $0x68] sm:$0xf] %v688
    %815 = vst [vmem:[#allocation2 + $0x6c] sm:$0xf] %v689
    %816 = vst [vmem:[#allocation2 + $0x70] sm:$0xf] %v690
    %817 = vst [vmem:[#allocation2 + $0x74] sm:$0xf] %v691
    %818 = vst [vmem:[#allocation2 + $0x78] sm:$0xf] %v692
    %819 = vst [vmem:[#allocation2 + $0x7c] sm:$0xf] %v693
    %820 = vst [vmem:[#allocation2 + $0x80] sm:$0xf] %v694
    %821 = vst [vmem:[#allocation2 + $0x84] sm:$0xf] %v695
    %822 = vst [vmem:[#allocation2 + $0x88] sm:$0xf] %v696
    %823 = vst [vmem:[#allocation2 + $0x8c] sm:$0xf] %v697
    %824 = vst [vmem:[#allocation2 + $0x90] sm:$0xf] %v698
    %825 = vst [vmem:[#allocation2 + $0x94] sm:$0xf] %v699
    %826 = vst [vmem:[#allocation2 + $0x98] sm:$0xf] %v700
    %827 = vst [vmem:[#allocation2 + $0x9c] sm:$0xf] %v701
    %828 = vst [vmem:[#allocation2 + $0xa0] sm:$0xf] %v702
    %829 = vst [vmem:[#allocation2 + $0xa4] sm:$0xf] %v703
    %830 = vst [vmem:[#allocation2 + $0xa8] sm:$0xf] %v704
    %831 = vst [vmem:[#allocation2 + $0xac] sm:$0xf] %v705
    %832 = vst [vmem:[#allocation2 + $0xb0] sm:$0xf] %v706
    %833 = vst [vmem:[#allocation2 + $0xb4] sm:$0xf] %v707
    %834 = vst [vmem:[#allocation2 + $0xb8] sm:$0xf] %v708
    %835 = vst [vmem:[#allocation2 + $0xbc] sm:$0xf] %v709
    %836 = vst [vmem:[#allocation2 + $0xc0] sm:$0xf] %v710
    %837 = vst [vmem:[#allocation2 + $0xc4] sm:$0xf] %v711
    %838 = vst [vmem:[#allocation2 + $0xc8] sm:$0xf] %v712
    %839 = vst [vmem:[#allocation2 + $0xcc] sm:$0xf] %v713
    %840 = vst [vmem:[#allocation2 + $0xd0] sm:$0xf] %v714
    %841 = vst [vmem:[#allocation2 + $0xd4] sm:$0xf] %v715
    %842 = vst [vmem:[#allocation2 + $0xd8] sm:$0xf] %v716
    %843 = vst [vmem:[#allocation2 + $0xdc] sm:$0xf] %v717
    %844 = vst [vmem:[#allocation2 + $0xe0] sm:$0xf] %v718
    %845 = vst [vmem:[#allocation2 + $0xe4] sm:$0xf] %v719
    %846 = vst [vmem:[#allocation2 + $0xe8] sm:$0xf] %v720
    %847 = vst [vmem:[#allocation2 + $0xec] sm:$0xf] %v721
    %848 = vst [vmem:[#allocation2 + $0xf0] sm:$0xf] %v722
    %849 = vst [vmem:[#allocation2 + $0xf4] sm:$0xf] %v723
    %850 = vst [vmem:[#allocation2 + $0xf8] sm:$0x3] %v724
    // Predicated region
    $region14: #{tpu_custom_call.1} parent=1 // pred_check
      _
    $region15: #{tpu_custom_call.1} parent=1 // pred_check_branch
      %852 = sbr.rel (0) target = $region17
    $region16: #{tpu_custom_call.1} parent=1 // pred_region
      %s854 = ssub.s32 4032, 4032
      %855 = vsyncadd [#allocation3], %s854
      %s856 = sshll.u32 [#allocation2], 4
      %s857 = int_to_ptr.vmem [resolvable:$true] %s856
      %862 = dma.vmem_to_hbm [thread:$0]  %s857, 4032, %s3, [#allocation3], 64, 64, 4
    $region17: #{tpu_custom_call.1} parent=1 // pred_fallthru
      _
    // Predicated region
    $region18: #{tpu_custom_call.1} parent=1 // pred_check
      _
    $region19: #{tpu_custom_call.1} parent=1 // pred_check_branch
      %864 = sbr.rel (0) target = $region21
    $region20: #{tpu_custom_call.1} parent=1 // pred_region
      %865 = dma.done [#allocation3], 4032
    $region21: #{tpu_custom_call.1} parent=1 // pred_fallthru
      _
    %866 = vsyncpa [#allocation3], 1

// kernel: tpu_custom_call.1
$region0: #{tpu_custom_call.1}
  #allocation0 [shape = 'u32[]', space=smem, size = 0x4, offset = 0x4, fixed_abs, tag = 'smem constant byte address 0x4 - core index']
  #allocation1 [shape = 'u32[144,128]{1,0:T(1,128)}', space=vmem, size = 0x12000, scoped, tag = 'internal scratch']
  %s0 = inlined_call_operand.vmem [shape: f32[500,64], index: 0, kind: input, shape index: {}]
  %s1 = inlined_call_operand.vmem [shape: bf16[64,128], index: 1, kind: input, shape index: {}]
  %s2 = inlined_call_operand.vmem [shape: f32[1,128], index: 2, kind: input, shape index: {}]
  %s3 = inlined_call_operand.hbm [shape: bf16[500,128], index: 3, kind: output, shape index: {}]
  %s4 = sld [smem:[#allocation0]]
  $region22: #{tpu_custom_call.1} parent=0
    _
  %s6 = ssub.s32 1, %s4
  %s7 = scalar_select 0, %s6, %s4
  $region1: #{tpu_custom_call.1} parent=0
    #allocation2 [shape = 'u8[129024]{0}', space=vmem, size = 0x1f800, scoped, tag = 'output window, operand 0, single buffered']
    #allocation3 [shape = 's32[1]{0}', space=sflag, size = 0x4, scoped, tag = 'scoped memory for tpu_custom_call.1']
    %8 = vsyncpa [#allocation3], 0
    // Predicated region
    $region2: #{tpu_custom_call.1} parent=1 // pred_check
      _
    $region3: #{tpu_custom_call.1} parent=1 // pred_check_branch
      %10 = sbr.rel (0) target = $region5
    $region4: #{tpu_custom_call.1} parent=1 // pred_region
      _
    $region5: #{tpu_custom_call.1} parent=1 // pred_fallthru
      _
    // Predicated region
    $region6: #{tpu_custom_call.1} parent=1 // pred_check
      _
    $region7: #{tpu_custom_call.1} parent=1 // pred_check_branch
      %12 = sbr.rel (0) target = $region9
    $region8: #{tpu_custom_call.1} parent=1 // pred_region
      _
    $region9: #{tpu_custom_call.1} parent=1 // pred_fallthru
      _
    // Predicated region
    $region10: #{tpu_custom_call.1} parent=1 // pred_check
      _
    $region11: #{tpu_custom_call.1} parent=1 // pred_check_branch
      %14 = sbr.rel (0) target = $region13
    $region12: #{tpu_custom_call.1} parent=1 // pred_region
      _
    $region13: #{tpu_custom_call.1} parent=1 // pred_fallthru
      _
    %v16 = vld [vmem:[%s0] sm:$0xff]
    %v17 = vld [vmem:[%s0 + $0x8] sm:$0xff]
    %v18 = vld [vmem:[%s0 + $0x10] sm:$0xff]
    %v19 = vld [vmem:[%s0 + $0x18] sm:$0xff]
    %v20 = vld [vmem:[%s0 + $0x20] sm:$0xff]
    %v21 = vld [vmem:[%s0 + $0x28] sm:$0xff]
    %v22 = vld [vmem:[%s0 + $0x30] sm:$0xff]
    %v23 = vld [vmem:[%s0 + $0x38] sm:$0xff]
    %v24 = vld [vmem:[%s0 + $0x40] sm:$0xff]
    %v25 = vld [vmem:[%s0 + $0x48] sm:$0xff]
    %v26 = vld [vmem:[%s0 + $0x50] sm:$0xff]
    %v27 = vld [vmem:[%s0 + $0x58] sm:$0xff]
    %v28 = vld [vmem:[%s0 + $0x60] sm:$0xff]
    %v29 = vld [vmem:[%s0 + $0x68] sm:$0xff]
    %v30 = vld [vmem:[%s0 + $0x70] sm:$0xff]
    %v31 = vld [vmem:[%s0 + $0x78] sm:$0xff]
    %v32 = vld [vmem:[%s0 + $0x80] sm:$0xff]
    %v33 = vld [vmem:[%s0 + $0x88] sm:$0xff]
    %v34 = vld [vmem:[%s0 + $0x90] sm:$0xff]
    %v35 = vld [vmem:[%s0 + $0x98] sm:$0xff]
    %v36 = vld [vmem:[%s0 + $0xa0] sm:$0xff]
    %v37 = vld [vmem:[%s0 + $0xa8] sm:$0xff]
    %v38 = vld [vmem:[%s0 + $0xb0] sm:$0xff]
    %v39 = vld [vmem:[%s0 + $0xb8] sm:$0xff]
    %v40 = vld [vmem:[%s0 + $0xc0] sm:$0xff]
    %v41 = vld [vmem:[%s0 + $0xc8] sm:$0xff]
    %v42 = vld [vmem:[%s0 + $0xd0] sm:$0xff]
    %v43 = vld [vmem:[%s0 + $0xd8] sm:$0xff]
    %v44 = vld [vmem:[%s0 + $0xe0] sm:$0xff]
    %v45 = vld [vmem:[%s0 + $0xe8] sm:$0xff]
    %v46 = vld [vmem:[%s0 + $0xf0] sm:$0xff]
    %v47 = vld [vmem:[%s0 + $0xf8] sm:$0xff]
    %v48 = vld [vmem:[%s0 + $0x100] sm:$0xff]
    %v49 = vld [vmem:[%s0 + $0x108] sm:$0xff]
    %v50 = vld [vmem:[%s0 + $0x110] sm:$0xff]
    %v51 = vld [vmem:[%s0 + $0x118] sm:$0xff]
    %v52 = vld [vmem:[%s0 + $0x120] sm:$0xff]
    %v53 = vld [vmem:[%s0 + $0x128] sm:$0xff]
    %v54 = vld [vmem:[%s0 + $0x130] sm:$0xff]
    %v55 = vld [vmem:[%s0 + $0x138] sm:$0xff]
    %v56 = vld [vmem:[%s0 + $0x140] sm:$0xff]
    %v57 = vld [vmem:[%s0 + $0x148] sm:$0xff]
    %v58 = vld [vmem:[%s0 + $0x150] sm:$0xff]
    %v59 = vld [vmem:[%s0 + $0x158] sm:$0xff]
    %v60 = vld [vmem:[%s0 + $0x160] sm:$0xff]
    %v61 = vld [vmem:[%s0 + $0x168] sm:$0xff]
    %v62 = vld [vmem:[%s0 + $0x170] sm:$0xff]
    %v63 = vld [vmem:[%s0 + $0x178] sm:$0xff]
    %v64 = vld [vmem:[%s0 + $0x180] sm:$0xff]
    %v65 = vld [vmem:[%s0 + $0x188] sm:$0xff]
    %v66 = vld [vmem:[%s0 + $0x190] sm:$0xff]
    %v67 = vld [vmem:[%s0 + $0x198] sm:$0xff]
    %v68 = vld [vmem:[%s0 + $0x1a0] sm:$0xff]
    %v69 = vld [vmem:[%s0 + $0x1a8] sm:$0xff]
    %v70 = vld [vmem:[%s0 + $0x1b0] sm:$0xff]
    %v71 = vld [vmem:[%s0 + $0x1b8] sm:$0xff]
    %v72 = vld [vmem:[%s0 + $0x1c0] sm:$0xff]
    %v73 = vld [vmem:[%s0 + $0x1c8] sm:$0xff]
    %v74 = vld [vmem:[%s0 + $0x1d0] sm:$0xff]
    %v75 = vld [vmem:[%s0 + $0x1d8] sm:$0xff]
    %v76 = vld [vmem:[%s0 + $0x1e0] sm:$0xff]
    %v77 = vld [vmem:[%s0 + $0x1e8] sm:$0xff]
    %v78 = vld [vmem:[%s0 + $0x1f0] sm:$0xf]
    %v79 = vpack.c.bf16 %v17, %v16
    %v80 = vpack.c.bf16 %v19, %v18
    %v81 = vpack.c.bf16 %v21, %v20
    %v82 = vpack.c.bf16 %v23, %v22
    %v83 = vpack.c.bf16 %v25, %v24
    %v84 = vpack.c.bf16 %v27, %v26
    %v85 = vpack.c.bf16 %v29, %v28
    %v86 = vpack.c.bf16 %v31, %v30
    %v87 = vpack.c.bf16 %v33, %v32
    %v88 = vpack.c.bf16 %v35, %v34
    %v89 = vpack.c.bf16 %v37, %v36
    %v90 = vpack.c.bf16 %v39, %v38
    %v91 = vpack.c.bf16 %v41, %v40
    %v92 = vpack.c.bf16 %v43, %v42
    %v93 = vpack.c.bf16 %v45, %v44
    %v94 = vpack.c.bf16 %v47, %v46
    %v95 = vpack.c.bf16 %v49, %v48
    %v96 = vpack.c.bf16 %v51, %v50
    %v97 = vpack.c.bf16 %v53, %v52
    %v98 = vpack.c.bf16 %v55, %v54
    %v99 = vpack.c.bf16 %v57, %v56
    %v100 = vpack.c.bf16 %v59, %v58
    %v101 = vpack.c.bf16 %v61, %v60
    %v102 = vpack.c.bf16 %v63, %v62
    %v103 = vpack.c.bf16 %v65, %v64
    %v104 = vpack.c.bf16 %v67, %v66
    %v105 = vpack.c.bf16 %v69, %v68
    %v106 = vpack.c.bf16 %v71, %v70
    %v107 = vpack.c.bf16 %v73, %v72
    %v108 = vpack.c.bf16 %v75, %v74
    %v109 = vpack.c.bf16 %v77, %v76
    %v110 = vpack.c.bf16 %v78, %v78
    %v111 = vld [vmem:[%s1] sm:$0xf]
    %v112 = vld [vmem:[%s1 + $0x4] sm:$0xf]
    %v113 = vld [vmem:[%s1 + $0x8] sm:$0xf]
    %v114 = vld [vmem:[%s1 + $0xc] sm:$0xf]
    %v115 = vld [vmem:[%s1 + $0x10] sm:$0xf]
    %v116 = vld [vmem:[%s1 + $0x14] sm:$0xf]
    %v117 = vld [vmem:[%s1 + $0x18] sm:$0xf]
    %v118 = vld [vmem:[%s1 + $0x1c] sm:$0xf]
    %v119 = vld [vmem:[%s2] sm:$0x1]
    %v121 = vlaneseq
    %v122 = vshrl.u32 %v121, 7
    %v123 = vsub.s32 0, %v122
    %v124 = vrot.slane %v119, %v123
    %v134 = vunpack.c.l.b16 %v111
    %v135 = vunpack.c.l.b16 %v112
    %v136 = vunpack.c.l.b16 %v113
    %v137 = vunpack.c.l.b16 %v114
    %v138 = vunpack.c.l.b16 %v115
    %v139 = vunpack.c.l.b16 %v116
    %v140 = vunpack.c.l.b16 %v117
    %v141 = vunpack.c.l.b16 %v118
    %v142 = vpack.c.b16 %v135, %v134
    %v143 = vpack.c.b16 %v137, %v136
    %v144 = vpack.c.b16 %v139, %v138
    %v145 = vpack.c.b16 %v141, %v140
    %vm150 = vcmask 523264
    %v152 = vsel %vm150, %v79, 0
    %v155 = vsel %vm150, %v80, 0
    %v158 = vsel %vm150, %v81, 0
    %v161 = vsel %vm150, %v82, 0
    %v164 = vsel %vm150, %v83, 0
    %v167 = vsel %vm150, %v84, 0
    %v170 = vsel %vm150, %v85, 0
    %v173 = vsel %vm150, %v86, 0
    %v176 = vsel %vm150, %v87, 0
    %v179 = vsel %vm150, %v88, 0
    %v182 = vsel %vm150, %v89, 0
    %v185 = vsel %vm150, %v90, 0
    %v188 = vsel %vm150, %v91, 0
    %v191 = vsel %vm150, %v92, 0
    %v194 = vsel %vm150, %v93, 0
    %v197 = vsel %vm150, %v94, 0
    %v200 = vsel %vm150, %v95, 0
    %v203 = vsel %vm150, %v96, 0
    %v206 = vsel %vm150, %v97, 0
    %v209 = vsel %vm150, %v98, 0
    %v212 = vsel %vm150, %v99, 0
    %v215 = vsel %vm150, %v100, 0
    %v218 = vsel %vm150, %v101, 0
    %v221 = vsel %vm150, %v102, 0
    %v224 = vsel %vm150, %v103, 0
    %v227 = vsel %vm150, %v104, 0
    %v230 = vsel %vm150, %v105, 0
    %v233 = vsel %vm150, %v106, 0
    %v236 = vsel %vm150, %v107, 0
    %v239 = vsel %vm150, %v108, 0
    %v242 = vsel %vm150, %v109, 0
    %v245 = vsel %vm150, %v110, 0
    %247 = vmatprep.subr.bf16.mxu0 0
    %248 = vmatpush1.bf16.msra.mxu0 0
    %249 = vmatprep.subr.bf16.mxu0 0
    %250 = vmatpush1.bf16.msra.mxu0 0
    %251 = vmatprep.subr.bf16.mxu0 0
    %252 = vmatpush1.bf16.msra.mxu0 0
    %253 = vmatprep.subr.bf16.mxu0 0
    %254 = vmatpush1.bf16.msra.mxu0 0
    %255 = vmatprep.subr.bf16.mxu0 0
    %256 = vmatpush1.bf16.msra.mxu0 %v145
    %257 = vmatprep.subr.bf16.mxu0 0
    %258 = vmatpush1.bf16.msra.mxu0 %v144
    %259 = vmatprep.subr.bf16.mxu0 0
    %260 = vmatpush1.bf16.msra.mxu0 %v143
    %261 = vmatprep.subr.bf16.mxu0 0
    %262 = vmatpush1.bf16.msra.mxu0 %v142
    %263 = vmatprep.subr.bf16.mxu0 0
    %264 = vmatpush2.bf16.msra.mxu0 0
    %265 = vmatprep.subr.bf16.mxu0 0
    %266 = vmatpush2.bf16.msra.mxu0 0
    %267 = vmatprep.subr.bf16.mxu0 0
    %268 = vmatpush2.bf16.msra.mxu0 0
    %269 = vmatprep.subr.bf16.mxu0 0
    %270 = vmatpush2.bf16.msra.mxu0 0
    %271 = vmatprep.subr.bf16.mxu0 0
    %272 = vmatpush2.bf16.msra.mxu0 0
    %273 = vmatprep.subr.bf16.mxu0 0
    %274 = vmatpush2.bf16.msra.mxu0 0
    %275 = vmatprep.subr.bf16.mxu0 0
    %276 = vmatpush2.bf16.msra.mxu0 0
    %277 = vmatprep.subr.bf16.mxu0 0
    %278 = vmatpush2.bf16.msra.mxu0 0
    %279 = vmatprep.mubr.bf16.mxu0 0
    %280 = vmatmul.mubr.bf16.gmra.mxu0 %v152
    %v281 = vpop.f32.mrf.mxu0
    %v282 = vadd.f32 %v124, %v281
    %v283 = vpop.f32.mrf.mxu0
    %v284 = vpop.f32.mrf.mxu0
    %v285 = vadd.f32 %v124, %v284
    %v286 = vpop.f32.mrf.mxu0
    %287 = vmatprep.mubr.bf16.mxu0 0
    %288 = vmatmul.mubr.bf16.gmra.mxu0 %v155
    %v289 = vpop.f32.mrf.mxu0
    %v290 = vadd.f32 %v124, %v289
    %v291 = vpop.f32.mrf.mxu0
    %v292 = vpop.f32.mrf.mxu0
    %v293 = vadd.f32 %v124, %v292
    %v294 = vpop.f32.mrf.mxu0
    %295 = vmatprep.mubr.bf16.mxu0 0
    %296 = vmatmul.mubr.bf16.gmra.mxu0 %v158
    %v297 = vpop.f32.mrf.mxu0
    %v298 = vadd.f32 %v124, %v297
    %v299 = vpop.f32.mrf.mxu0
    %v300 = vpop.f32.mrf.mxu0
    %v301 = vadd.f32 %v124, %v300
    %v302 = vpop.f32.mrf.mxu0
    %303 = vmatprep.mubr.bf16.mxu0 0
    %304 = vmatmul.mubr.bf16.gmra.mxu0 %v161
    %v305 = vpop.f32.mrf.mxu0
    %v306 = vadd.f32 %v124, %v305
    %v307 = vpop.f32.mrf.mxu0
    %v308 = vpop.f32.mrf.mxu0
    %v309 = vadd.f32 %v124, %v308
    %v310 = vpop.f32.mrf.mxu0
    %311 = vmatprep.mubr.bf16.mxu0 0
    %312 = vmatmul.mubr.bf16.gmra.mxu0 %v164
    %v313 = vpop.f32.mrf.mxu0
    %v314 = vadd.f32 %v124, %v313
    %v315 = vpop.f32.mrf.mxu0
    %v316 = vpop.f32.mrf.mxu0
    %v317 = vadd.f32 %v124, %v316
    %v318 = vpop.f32.mrf.mxu0
    %319 = vmatprep.mubr.bf16.mxu0 0
    %320 = vmatmul.mubr.bf16.gmra.mxu0 %v167
    %v321 = vpop.f32.mrf.mxu0
    %v322 = vadd.f32 %v124, %v321
    %v323 = vpop.f32.mrf.mxu0
    %v324 = vpop.f32.mrf.mxu0
    %v325 = vadd.f32 %v124, %v324
    %v326 = vpop.f32.mrf.mxu0
    %327 = vmatprep.mubr.bf16.mxu0 0
    %328 = vmatmul.mubr.bf16.gmra.mxu0 %v170
    %v329 = vpop.f32.mrf.mxu0
    %v330 = vadd.f32 %v124, %v329
    %v331 = vpop.f32.mrf.mxu0
    %v332 = vpop.f32.mrf.mxu0
    %v333 = vadd.f32 %v124, %v332
    %v334 = vpop.f32.mrf.mxu0
    %335 = vmatprep.mubr.bf16.mxu0 0
    %336 = vmatmul.mubr.bf16.gmra.mxu0 %v173
    %v337 = vpop.f32.mrf.mxu0
    %v338 = vadd.f32 %v124, %v337
    %v339 = vpop.f32.mrf.mxu0
    %v340 = vpop.f32.mrf.mxu0
    %v341 = vadd.f32 %v124, %v340
    %v342 = vpop.f32.mrf.mxu0
    %343 = vmatprep.mubr.bf16.mxu0 0
    %344 = vmatmul.mubr.bf16.gmra.mxu0 %v176
    %v345 = vpop.f32.mrf.mxu0
    %v346 = vadd.f32 %v124, %v345
    %v347 = vpop.f32.mrf.mxu0
    %v348 = vpop.f32.mrf.mxu0
    %v349 = vadd.f32 %v124, %v348
    %v350 = vpop.f32.mrf.mxu0
    %351 = vmatprep.mubr.bf16.mxu0 0
    %352 = vmatmul.mubr.bf16.gmra.mxu0 %v179
    %v353 = vpop.f32.mrf.mxu0
    %v354 = vadd.f32 %v124, %v353
    %v355 = vpop.f32.mrf.mxu0
    %v356 = vpop.f32.mrf.mxu0
    %v357 = vadd.f32 %v124, %v356
    %v358 = vpop.f32.mrf.mxu0
    %359 = vmatprep.mubr.bf16.mxu0 0
    %360 = vmatmul.mubr.bf16.gmra.mxu0 %v182
    %v361 = vpop.f32.mrf.mxu0
    %v362 = vadd.f32 %v124, %v361
    %v363 = vpop.f32.mrf.mxu0
    %v364 = vpop.f32.mrf.mxu0
    %v365 = vadd.f32 %v124, %v364
    %v366 = vpop.f32.mrf.mxu0
    %367 = vmatprep.mubr.bf16.mxu0 0
    %368 = vmatmul.mubr.bf16.gmra.mxu0 %v185
    %v369 = vpop.f32.mrf.mxu0
    %v370 = vadd.f32 %v124, %v369
    %v371 = vpop.f32.mrf.mxu0
    %v372 = vpop.f32.mrf.mxu0
    %v373 = vadd.f32 %v124, %v372
    %v374 = vpop.f32.mrf.mxu0
    %375 = vmatprep.mubr.bf16.mxu0 0
    %376 = vmatmul.mubr.bf16.gmra.mxu0 %v188
    %v377 = vpop.f32.mrf.mxu0
    %v378 = vadd.f32 %v124, %v377
    %v379 = vpop.f32.mrf.mxu0
    %v380 = vpop.f32.mrf.mxu0
    %v381 = vadd.f32 %v124, %v380
    %v382 = vpop.f32.mrf.mxu0
    %383 = vmatprep.mubr.bf16.mxu0 0
    %384 = vmatmul.mubr.bf16.gmra.mxu0 %v191
    %v385 = vpop.f32.mrf.mxu0
    %v386 = vadd.f32 %v124, %v385
    %v387 = vpop.f32.mrf.mxu0
    %v388 = vpop.f32.mrf.mxu0
    %v389 = vadd.f32 %v124, %v388
    %v390 = vpop.f32.mrf.mxu0
    %391 = vmatprep.mubr.bf16.mxu0 0
    %392 = vmatmul.mubr.bf16.gmra.mxu0 %v194
    %v393 = vpop.f32.mrf.mxu0
    %v394 = vadd.f32 %v124, %v393
    %v395 = vpop.f32.mrf.mxu0
    %v396 = vpop.f32.mrf.mxu0
    %v397 = vadd.f32 %v124, %v396
    %v398 = vpop.f32.mrf.mxu0
    %399 = vmatprep.mubr.bf16.mxu0 0
    %400 = vmatmul.mubr.bf16.gmra.mxu0 %v197
    %v401 = vpop.f32.mrf.mxu0
    %v402 = vadd.f32 %v124, %v401
    %v403 = vpop.f32.mrf.mxu0
    %v404 = vpop.f32.mrf.mxu0
    %v405 = vadd.f32 %v124, %v404
    %v406 = vpop.f32.mrf.mxu0
    %407 = vmatprep.mubr.bf16.mxu0 0
    %408 = vmatmul.mubr.bf16.gmra.mxu0 %v200
    %v409 = vpop.f32.mrf.mxu0
    %v410 = vadd.f32 %v124, %v409
    %v411 = vpop.f32.mrf.mxu0
    %v412 = vpop.f32.mrf.mxu0
    %v413 = vadd.f32 %v124, %v412
    %v414 = vpop.f32.mrf.mxu0
    %415 = vmatprep.mubr.bf16.mxu0 0
    %416 = vmatmul.mubr.bf16.gmra.mxu0 %v203
    %v417 = vpop.f32.mrf.mxu0
    %v418 = vadd.f32 %v124, %v417
    %v419 = vpop.f32.mrf.mxu0
    %v420 = vpop.f32.mrf.mxu0
    %v421 = vadd.f32 %v124, %v420
    %v422 = vpop.f32.mrf.mxu0
    %423 = vmatprep.mubr.bf16.mxu0 0
    %424 = vmatmul.mubr.bf16.gmra.mxu0 %v206
    %v425 = vpop.f32.mrf.mxu0
    %v426 = vadd.f32 %v124, %v425
    %v427 = vpop.f32.mrf.mxu0
    %v428 = vpop.f32.mrf.mxu0
    %v429 = vadd.f32 %v124, %v428
    %v430 = vpop.f32.mrf.mxu0
    %431 = vmatprep.mubr.bf16.mxu0 0
    %432 = vmatmul.mubr.bf16.gmra.mxu0 %v209
    %v433 = vpop.f32.mrf.mxu0
    %v434 = vadd.f32 %v124, %v433
    %v435 = vpop.f32.mrf.mxu0
    %v436 = vpop.f32.mrf.mxu0
    %v437 = vadd.f32 %v124, %v436
    %v438 = vpop.f32.mrf.mxu0
    %439 = vmatprep.mubr.bf16.mxu0 0
    %440 = vmatmul.mubr.bf16.gmra.mxu0 %v212
    %v441 = vpop.f32.mrf.mxu0
    %v442 = vadd.f32 %v124, %v441
    %v443 = vpop.f32.mrf.mxu0
    %v444 = vpop.f32.mrf.mxu0
    %v445 = vadd.f32 %v124, %v444
    %v446 = vpop.f32.mrf.mxu0
    %447 = vmatprep.mubr.bf16.mxu0 0
    %448 = vmatmul.mubr.bf16.gmra.mxu0 %v215
    %v449 = vpop.f32.mrf.mxu0
    %v450 = vadd.f32 %v124, %v449
    %v451 = vpop.f32.mrf.mxu0
    %v452 = vpop.f32.mrf.mxu0
    %v453 = vadd.f32 %v124, %v452
    %v454 = vpop.f32.mrf.mxu0
    %455 = vmatprep.mubr.bf16.mxu0 0
    %456 = vmatmul.mubr.bf16.gmra.mxu0 %v218
    %v457 = vpop.f32.mrf.mxu0
    %v458 = vadd.f32 %v124, %v457
    %v459 = vpop.f32.mrf.mxu0
    %v460 = vpop.f32.mrf.mxu0
    %v461 = vadd.f32 %v124, %v460
    %v462 = vpop.f32.mrf.mxu0
    %463 = vmatprep.mubr.bf16.mxu0 0
    %464 = vmatmul.mubr.bf16.gmra.mxu0 %v221
    %v465 = vpop.f32.mrf.mxu0
    %v466 = vadd.f32 %v124, %v465
    %v467 = vpop.f32.mrf.mxu0
    %v468 = vpop.f32.mrf.mxu0
    %v469 = vadd.f32 %v124, %v468
    %v470 = vpop.f32.mrf.mxu0
    %471 = vmatprep.mubr.bf16.mxu0 0
    %472 = vmatmul.mubr.bf16.gmra.mxu0 %v224
    %v473 = vpop.f32.mrf.mxu0
    %v474 = vadd.f32 %v124, %v473
    %v475 = vpop.f32.mrf.mxu0
    %v476 = vpop.f32.mrf.mxu0
    %v477 = vadd.f32 %v124, %v476
    %v478 = vpop.f32.mrf.mxu0
    %479 = vmatprep.mubr.bf16.mxu0 0
    %480 = vmatmul.mubr.bf16.gmra.mxu0 %v227
    %v481 = vpop.f32.mrf.mxu0
    %v482 = vadd.f32 %v124, %v481
    %v483 = vpop.f32.mrf.mxu0
    %v484 = vpop.f32.mrf.mxu0
    %v485 = vadd.f32 %v124, %v484
    %v486 = vpop.f32.mrf.mxu0
    %487 = vmatprep.mubr.bf16.mxu0 0
    %488 = vmatmul.mubr.bf16.gmra.mxu0 %v230
    %v489 = vpop.f32.mrf.mxu0
    %v490 = vadd.f32 %v124, %v489
    %v491 = vpop.f32.mrf.mxu0
    %v492 = vpop.f32.mrf.mxu0
    %v493 = vadd.f32 %v124, %v492
    %v494 = vpop.f32.mrf.mxu0
    %495 = vmatprep.mubr.bf16.mxu0 0
    %496 = vmatmul.mubr.bf16.gmra.mxu0 %v233
    %v497 = vpop.f32.mrf.mxu0
    %v498 = vadd.f32 %v124, %v497
    %v499 = vpop.f32.mrf.mxu0
    %v500 = vpop.f32.mrf.mxu0
    %v501 = vadd.f32 %v124, %v500
    %v502 = vpop.f32.mrf.mxu0
    %503 = vmatprep.mubr.bf16.mxu0 0
    %504 = vmatmul.mubr.bf16.gmra.mxu0 %v236
    %v505 = vpop.f32.mrf.mxu0
    %v506 = vadd.f32 %v124, %v505
    %v507 = vpop.f32.mrf.mxu0
    %v508 = vpop.f32.mrf.mxu0
    %v509 = vadd.f32 %v124, %v508
    %v510 = vpop.f32.mrf.mxu0
    %511 = vmatprep.mubr.bf16.mxu0 0
    %512 = vmatmul.mubr.bf16.gmra.mxu0 %v239
    %v513 = vpop.f32.mrf.mxu0
    %v514 = vadd.f32 %v124, %v513
    %v515 = vpop.f32.mrf.mxu0
    %v516 = vpop.f32.mrf.mxu0
    %v517 = vadd.f32 %v124, %v516
    %v518 = vpop.f32.mrf.mxu0
    %519 = vmatprep.mubr.bf16.mxu0 0
    %520 = vmatmul.mubr.bf16.gmra.mxu0 %v242
    %v521 = vpop.f32.mrf.mxu0
    %v522 = vadd.f32 %v124, %v521
    %v523 = vpop.f32.mrf.mxu0
    %v524 = vpop.f32.mrf.mxu0
    %v525 = vadd.f32 %v124, %v524
    %v526 = vpop.f32.mrf.mxu0
    %527 = vmatprep.mubr.bf16.mxu0 0
    %528 = vmatmul.mubr.bf16.gmra.mxu0 %v245
    %v529 = vpop.f32.mrf.mxu0
    %v530 = vadd.f32 %v124, %v529
    %v531 = vpop.f32.mrf.mxu0
    %v532 = vpop.f32.mrf.mxu0
    %v533 = vpop.f32.mrf.mxu0
    %534 = vdwg.mxu0
    %v535 = vpack.c.bf16 %v285, %v282
    %v536 = vpack.c.bf16 %v293, %v290
    %v537 = vpack.c.bf16 %v301, %v298
    %v538 = vpack.c.bf16 %v309, %v306
    %v539 = vpack.c.bf16 %v317, %v314
    %v540 = vpack.c.bf16 %v325, %v322
    %v541 = vpack.c.bf16 %v333, %v330
    %v542 = vpack.c.bf16 %v341, %v338
    %v543 = vpack.c.bf16 %v349, %v346
    %v544 = vpack.c.bf16 %v357, %v354
    %v545 = vpack.c.bf16 %v365, %v362
    %v546 = vpack.c.bf16 %v373, %v370
    %v547 = vpack.c.bf16 %v381, %v378
    %v548 = vpack.c.bf16 %v389, %v386
    %v549 = vpack.c.bf16 %v397, %v394
    %v550 = vpack.c.bf16 %v405, %v402
    %v551 = vpack.c.bf16 %v413, %v410
    %v552 = vpack.c.bf16 %v421, %v418
    %v553 = vpack.c.bf16 %v429, %v426
    %v554 = vpack.c.bf16 %v437, %v434
    %v555 = vpack.c.bf16 %v445, %v442
    %v556 = vpack.c.bf16 %v453, %v450
    %v557 = vpack.c.bf16 %v461, %v458
    %v558 = vpack.c.bf16 %v469, %v466
    %v559 = vpack.c.bf16 %v477, %v474
    %v560 = vpack.c.bf16 %v485, %v482
    %v561 = vpack.c.bf16 %v493, %v490
    %v562 = vpack.c.bf16 %v501, %v498
    %v563 = vpack.c.bf16 %v509, %v506
    %v564 = vpack.c.bf16 %v517, %v514
    %v565 = vpack.c.bf16 %v525, %v522
    %v566 = vpack.c.bf16 %v530, %v530
    %v599 = vunpack.c.l.b16 %v535
    %v600 = vunpack.c.h.b16 %v535
    %v601 = vunpack.c.l.b16 %v536
    %v602 = vunpack.c.h.b16 %v536
    %v603 = vunpack.c.l.b16 %v537
    %v604 = vunpack.c.h.b16 %v537
    %v605 = vunpack.c.l.b16 %v538
    %v606 = vunpack.c.h.b16 %v538
    %v607 = vunpack.c.l.b16 %v539
    %v608 = vunpack.c.h.b16 %v539
    %v609 = vunpack.c.l.b16 %v540
    %v610 = vunpack.c.h.b16 %v540
    %v611 = vunpack.c.l.b16 %v541
    %v612 = vunpack.c.h.b16 %v541
    %v613 = vunpack.c.l.b16 %v542
    %v614 = vunpack.c.h.b16 %v542
    %v615 = vunpack.c.l.b16 %v543
    %v616 = vunpack.c.h.b16 %v543
    %v617 = vunpack.c.l.b16 %v544
    %v618 = vunpack.c.h.b16 %v544
    %v619 = vunpack.c.l.b16 %v545
    %v620 = vunpack.c.h.b16 %v545
    %v621 = vunpack.c.l.b16 %v546
    %v622 = vunpack.c.h.b16 %v546
    %v623 = vunpack.c.l.b16 %v547
    %v624 = vunpack.c.h.b16 %v547
    %v625 = vunpack.c.l.b16 %v548
    %v626 = vunpack.c.h.b16 %v548
    %v627 = vunpack.c.l.b16 %v549
    %v628 = vunpack.c.h.b16 %v549
    %v629 = vunpack.c.l.b16 %v550
    %v630 = vunpack.c.h.b16 %v550
    %v631 = vunpack.c.l.b16 %v551
    %v632 = vunpack.c.h.b16 %v551
    %v633 = vunpack.c.l.b16 %v552
    %v634 = vunpack.c.h.b16 %v552
    %v635 = vunpack.c.l.b16 %v553
    %v636 = vunpack.c.h.b16 %v553
    %v637 = vunpack.c.l.b16 %v554
    %v638 = vunpack.c.h.b16 %v554
    %v639 = vunpack.c.l.b16 %v555
    %v640 = vunpack.c.h.b16 %v555
    %v641 = vunpack.c.l.b16 %v556
    %v642 = vunpack.c.h.b16 %v556
    %v643 = vunpack.c.l.b16 %v557
    %v644 = vunpack.c.h.b16 %v557
    %v645 = vunpack.c.l.b16 %v558
    %v646 = vunpack.c.h.b16 %v558
    %v647 = vunpack.c.l.b16 %v559
    %v648 = vunpack.c.h.b16 %v559
    %v649 = vunpack.c.l.b16 %v560
    %v650 = vunpack.c.h.b16 %v560
    %v651 = vunpack.c.l.b16 %v561
    %v652 = vunpack.c.h.b16 %v561
    %v653 = vunpack.c.l.b16 %v562
    %v654 = vunpack.c.h.b16 %v562
    %v655 = vunpack.c.l.b16 %v563
    %v656 = vunpack.c.h.b16 %v563
    %v657 = vunpack.c.l.b16 %v564
    %v658 = vunpack.c.h.b16 %v564
    %v659 = vunpack.c.l.b16 %v565
    %v660 = vunpack.c.h.b16 %v565
    %v661 = vunpack.c.l.b16 %v566
    %v662 = vpack.c.b16 %v599, %v599
    %v663 = vpack.c.b16 %v600, %v600
    %v664 = vpack.c.b16 %v601, %v601
    %v665 = vpack.c.b16 %v602, %v602
    %v666 = vpack.c.b16 %v603, %v603
    %v667 = vpack.c.b16 %v604, %v604
    %v668 = vpack.c.b16 %v605, %v605
    %v669 = vpack.c.b16 %v606, %v606
    %v670 = vpack.c.b16 %v607, %v607
    %v671 = vpack.c.b16 %v608, %v608
    %v672 = vpack.c.b16 %v609, %v609
    %v673 = vpack.c.b16 %v610, %v610
    %v674 = vpack.c.b16 %v611, %v611
    %v675 = vpack.c.b16 %v612, %v612
    %v676 = vpack.c.b16 %v613, %v613
    %v677 = vpack.c.b16 %v614, %v614
    %v678 = vpack.c.b16 %v615, %v615
    %v679 = vpack.c.b16 %v616, %v616
    %v680 = vpack.c.b16 %v617, %v617
    %v681 = vpack.c.b16 %v618, %v618
    %v682 = vpack.c.b16 %v619, %v619
    %v683 = vpack.c.b16 %v620, %v620
    %v684 = vpack.c.b16 %v621, %v621
    %v685 = vpack.c.b16 %v622, %v622
    %v686 = vpack.c.b16 %v623, %v623
    %v687 = vpack.c.b16 %v624, %v624
    %v688 = vpack.c.b16 %v625, %v625
    %v689 = vpack.c.b16 %v626, %v626
    %v690 = vpack.c.b16 %v627, %v627
    %v691 = vpack.c.b16 %v628, %v628
    %v692 = vpack.c.b16 %v629, %v629
    %v693 = vpack.c.b16 %v630, %v630
    %v694 = vpack.c.b16 %v631, %v631
    %v695 = vpack.c.b16 %v632, %v632
    %v696 = vpack.c.b16 %v633, %v633
    %v697 = vpack.c.b16 %v634, %v634
    %v698 = vpack.c.b16 %v635, %v635
    %v699 = vpack.c.b16 %v636, %v636
    %v700 = vpack.c.b16 %v637, %v637
    %v701 = vpack.c.b16 %v638, %v638
    %v702 = vpack.c.b16 %v639, %v639
    %v703 = vpack.c.b16 %v640, %v640
    %v704 = vpack.c.b16 %v641, %v641
    %v705 = vpack.c.b16 %v642, %v642
    %v706 = vpack.c.b16 %v643, %v643
    %v707 = vpack.c.b16 %v644, %v644
    %v708 = vpack.c.b16 %v645, %v645
    %v709 = vpack.c.b16 %v646, %v646
    %v710 = vpack.c.b16 %v647, %v647
    %v711 = vpack.c.b16 %v648, %v648
    %v712 = vpack.c.b16 %v649, %v649
    %v713 = vpack.c.b16 %v650, %v650
    %v714 = vpack.c.b16 %v651, %v651
    %v715 = vpack.c.b16 %v652, %v652
    %v716 = vpack.c.b16 %v653, %v653
    %v717 = vpack.c.b16 %v654, %v654
    %v718 = vpack.c.b16 %v655, %v655
    %v719 = vpack.c.b16 %v656, %v656
    %v720 = vpack.c.b16 %v657, %v657
    %v721 = vpack.c.b16 %v658, %v658
    %v722 = vpack.c.b16 %v659, %v659
    %v723 = vpack.c.b16 %v660, %v660
    %v724 = vpack.c.b16 %v661, %v661
    %788 = vst [vmem:[#allocation2] sm:$0xf] %v662
    %789 = vst [vmem:[#allocation2 + $0x4] sm:$0xf] %v663
    %790 = vst [vmem:[#allocation2 + $0x8] sm:$0xf] %v664
    %791 = vst [vmem:[#allocation2 + $0xc] sm:$0xf] %v665
    %792 = vst [vmem:[#allocation2 + $0x10] sm:$0xf] %v666
    %793 = vst [vmem:[#allocation2 + $0x14] sm:$0xf] %v667
    %794 = vst [vmem:[#allocation2 + $0x18] sm:$0xf] %v668
    %795 = vst [vmem:[#allocation2 + $0x1c] sm:$0xf] %v669
    %796 = vst [vmem:[#allocation2 + $0x20] sm:$0xf] %v670
    %797 = vst [vmem:[#allocation2 + $0x24] sm:$0xf] %v671
    %798 = vst [vmem:[#allocation2 + $0x28] sm:$0xf] %v672
    %799 = vst [vmem:[#allocation2 + $0x2c] sm:$0xf] %v673
    %800 = vst [vmem:[#allocation2 + $0x30] sm:$0xf] %v674
    %801 = vst [vmem:[#allocation2 + $0x34] sm:$0xf] %v675
    %802 = vst [vmem:[#allocation2 + $0x38] sm:$0xf] %v676
    %803 = vst [vmem:[#allocation2 + $0x3c] sm:$0xf] %v677
    %804 = vst [vmem:[#allocation2 + $0x40] sm:$0xf] %v678
    %805 = vst [vmem:[#allocation2 + $0x44] sm:$0xf] %v679
    %806 = vst [vmem:[#allocation2 + $0x48] sm:$0xf] %v680
    %807 = vst [vmem:[#allocation2 + $0x4c] sm:$0xf] %v681
    %808 = vst [vmem:[#allocation2 + $0x50] sm:$0xf] %v682
    %809 = vst [vmem:[#allocation2 + $0x54] sm:$0xf] %v683
    %810 = vst [vmem:[#allocation2 + $0x58] sm:$0xf] %v684
    %811 = vst [vmem:[#allocation2 + $0x5c] sm:$0xf] %v685
    %812 = vst [vmem:[#allocation2 + $0x60] sm:$0xf] %v686
    %813 = vst [vmem:[#allocation2 + $0x64] sm:$0xf] %v687
    %814 = vst [vmem:[#allocation2 + $0x68] sm:$0xf] %v688
    %815 = vst [vmem:[#allocation2 + $0x6c] sm:$0xf] %v689
    %816 = vst [vmem:[#allocation2 + $0x70] sm:$0xf] %v690
    %817 = vst [vmem:[#allocation2 + $0x74] sm:$0xf] %v691
    %818 = vst [vmem:[#allocation2 + $0x78] sm:$0xf] %v692
    %819 = vst [vmem:[#allocation2 + $0x7c] sm:$0xf] %v693
    %820 = vst [vmem:[#allocation2 + $0x80] sm:$0xf] %v694
    %821 = vst [vmem:[#allocation2 + $0x84] sm:$0xf] %v695
    %822 = vst [vmem:[#allocation2 + $0x88] sm:$0xf] %v696
    %823 = vst [vmem:[#allocation2 + $0x8c] sm:$0xf] %v697
    %824 = vst [vmem:[#allocation2 + $0x90] sm:$0xf] %v698
    %825 = vst [vmem:[#allocation2 + $0x94] sm:$0xf] %v699
    %826 = vst [vmem:[#allocation2 + $0x98] sm:$0xf] %v700
    %827 = vst [vmem:[#allocation2 + $0x9c] sm:$0xf] %v701
    %828 = vst [vmem:[#allocation2 + $0xa0] sm:$0xf] %v702
    %829 = vst [vmem:[#allocation2 + $0xa4] sm:$0xf] %v703
    %830 = vst [vmem:[#allocation2 + $0xa8] sm:$0xf] %v704
    %831 = vst [vmem:[#allocation2 + $0xac] sm:$0xf] %v705
    %832 = vst [vmem:[#allocation2 + $0xb0] sm:$0xf] %v706
    %833 = vst [vmem:[#allocation2 + $0xb4] sm:$0xf] %v707
    %834 = vst [vmem:[#allocation2 + $0xb8] sm:$0xf] %v708
    %835 = vst [vmem:[#allocation2 + $0xbc] sm:$0xf] %v709
    %836 = vst [vmem:[#allocation2 + $0xc0] sm:$0xf] %v710
    %837 = vst [vmem:[#allocation2 + $0xc4] sm:$0xf] %v711
    %838 = vst [vmem:[#allocation2 + $0xc8] sm:$0xf] %v712
    %839 = vst [vmem:[#allocation2 + $0xcc] sm:$0xf] %v713
    %840 = vst [vmem:[#allocation2 + $0xd0] sm:$0xf] %v714
    %841 = vst [vmem:[#allocation2 + $0xd4] sm:$0xf] %v715
    %842 = vst [vmem:[#allocation2 + $0xd8] sm:$0xf] %v716
    %843 = vst [vmem:[#allocation2 + $0xdc] sm:$0xf] %v717
    %844 = vst [vmem:[#allocation2 + $0xe0] sm:$0xf] %v718
    %845 = vst [vmem:[#allocation2 + $0xe4] sm:$0xf] %v719
    %846 = vst [vmem:[#allocation2 + $0xe8] sm:$0xf] %v720
    %847 = vst [vmem:[#allocation2 + $0xec] sm:$0xf] %v721
    %848 = vst [vmem:[#allocation2 + $0xf0] sm:$0xf] %v722
    %849 = vst [vmem:[#allocation2 + $0xf4] sm:$0xf] %v723
    %850 = vst [vmem:[#allocation2 + $0xf8] sm:$0x3] %v724
    // Predicated region
    $region14: #{tpu_custom_call.1} parent=1 // pred_check
      _
    $region15: #{tpu_custom_call.1} parent=1 // pred_check_branch
      %852 = sbr.rel (0) target = $region17
    $region16: #{tpu_custom_call.1} parent=1 // pred_region
      %s854 = ssub.s32 4032, 4032
      %855 = vsyncadd [#allocation3], %s854
      %s856 = sshll.u32 [#allocation2], 4
      %s857 = int_to_ptr.vmem [resolvable:$true] %s856
      %862 = dma.vmem_to_hbm [thread:$0]  %s857, 4032, %s3, [#allocation3], 64, 64, 4
    $region17: #{tpu_custom_call.1} parent=1 // pred_fallthru
      _
    // Predicated region
    $region18: #{tpu_custom_call.1} parent=1 // pred_check
      _
    $region19: #{tpu_custom_call.1} parent=1 // pred_check_branch
      %864 = sbr.rel (0) target = $region21
    $region20: #{tpu_custom_call.1} parent=1 // pred_region
      %865 = dma.done [#allocation3], 4032
    $region21: #{tpu_custom_call.1} parent=1 // pred_fallthru
      _
    %866 = vsyncpa [#allocation3], 1

</llo_original>
